<compile_context>
chip_gen: v5e
topology: v5e:2x2
jax: 0.10.0
libtpu: 0.0.40
codegen_flags: <defaults>
</compile_context>

<pallas_src>
import math

import jax
import jax.numpy as jnp
from jax import lax
from jax.experimental import pallas as pl
from jax.experimental.pallas import tpu as pltpu

# ---------------- synthetic (small) config ----------------
B = 2            # batch
T = 16           # mel frames (max_len)
N_MEL = 16       # n_mel_channels
D_MODEL = 32     # d_melencoder (encoder_hidden)
N_SPECTRAL = 2   # spectral_layer
N_TEMPORAL = 2   # temporal_layer
N_ATTN = 1       # slf_attn_layer
N_HEAD = 2       # slf_attn_head
D_K = D_MODEL // N_HEAD
D_V = D_MODEL // N_HEAD
KERNEL_SIZE = 5  # conv_kernel_size
LN_EPS = 1e-5
NEG_BIAS = -1e9  # finite "masked" bias (avoids inf - inf NaNs)


def _mish(x):
    return x * jnp.tanh(jax.nn.softplus(x))


def mel_style_encoder(mel, mask, packed):
    """mel: (B, T, N_MEL) f32; mask: (B, T) bool, True = padded key position."""
    b, t, n_mel = mel.shape
    bbt = b * t
    pad = (KERNEL_SIZE - 1) // 2

    # whole batch folded into one grid step: at these dims the workload is
    # overhead-dominated, so splitting across grid steps / cores is a wash.
    mel2d = mel.reshape(bbt, n_mel)

    # additive attention bias (hoisted out of the kernel): 0 = keep, -1e9 = padded key
    attn_bias = jnp.where(mask, NEG_BIAS, 0.0).astype(jnp.float32)[:, None, :]  # (B,1,T)

    def kernel(mel_ref, bias_ref, fc1s_w_ref, spec_w_ref, conv_w_ref, conv_b_ref,
               wqkv_ref, wo_ref, ln_g_ref, ln_b_ref, fc2_w_ref, out_ref):
        f32 = jnp.float32

        # ---- fc_1 folded with spectral layer 0 (fc_1 has no activation) ----
        enc = _mish(jnp.dot(mel_ref[...], fc1s_w_ref[...],
                            preferred_element_type=f32))                 # (B*T, D)

        # ---- remaining spectral stack: FCBlock(D, D, activation=Mish) ----
        for l in range(N_SPECTRAL - 1):
            enc = _mish(jnp.dot(enc, spec_w_ref[l], preferred_element_type=f32))

        # ---- hoisted constants for the temporal stack ----
        r = lax.broadcasted_iota(jnp.int32, (bbt, 1), 0)
        seq_off = jnp.zeros_like(r)
        for i in range(1, b):                   # frame index within its own sequence
            seq_off = seq_off + jnp.where(r >= i * t, t, 0)
        tpos = r - seq_off
        tap_valid = [
            jnp.logical_and(tpos + (j - pad) >= 0, tpos + (j - pad) < t)
            for j in range(KERNEL_SIZE)
        ]

        # ---- temporal stack: Conv1DBlock(D->2D, k, Mish) + GLU + residual ----
        # Each tap is an XLU roll (masked so "same" zero-padding holds and rolls do not
        # leak across folded batch boundaries); K small matmuls accumulate into h.
        for l in range(N_TEMPORAL):
            residual = enc
            h = jnp.dot(enc, conv_w_ref[l, pad], preferred_element_type=f32)  # center tap
            for j in range(KERNEL_SIZE):
                if j == pad:
                    continue
                s = j - pad
                rolled = pltpu.roll(enc, shift=(-s) % bbt, axis=0)
                tap = jnp.where(tap_valid[j], rolled, 0.0)
                h = h + jnp.dot(tap, conv_w_ref[l, j], preferred_element_type=f32)
            h = _mish(h + conv_b_ref[l])                                 # conv bias + Mish
            glu = h[:, :D_MODEL] * jax.nn.sigmoid(h[:, D_MODEL:])        # nn.GLU(dim=-1)
            enc = residual + glu

        # ---- self-attention stack (fused QKV, per-head output projection, post-LN) ----
        bias_rows = [bias_ref[i] for i in range(b)]                      # each (1, T)
        for l in range(N_ATTN):
            residual = enc
            # columns are per-head contiguous: [Q_h | K_h | V_h] blocks of width 3*D_K;
            # 1/sqrt(d_k) is folded into the Q weights at pack time.
            qkv = jnp.dot(enc, wqkv_ref[l], preferred_element_type=f32)  # (B*T, 3D)
            attn_parts = []
            for i in range(b):
                qkv_b = qkv[i * t:(i + 1) * t, :]
                acc = None
                for h_ in range(N_HEAD):
                    blk = qkv_b[:, h_ * 3 * D_K:(h_ + 1) * 3 * D_K]
                    qh = blk[:, :D_K]
                    kh = blk[:, D_K:2 * D_K]
                    vh = blk[:, 2 * D_K:3 * D_K]
                    scores = lax.dot_general(
                        qh, kh, dimension_numbers=(((1,), (1,)), ((), ())),
                        preferred_element_type=f32) + bias_rows[i]
                    m = jnp.max(scores, axis=-1, keepdims=True)
                    e = jnp.exp(scores - m)
                    p = e * pl.reciprocal(jnp.sum(e, axis=-1, keepdims=True), approx=True)
                    pv = jnp.dot(p, vh, preferred_element_type=f32)      # (T, D_V)
                    # concat-over-heads + fc == sum of per-head (D_V, D) projections
                    contrib = jnp.dot(pv, wo_ref[l, h_], preferred_element_type=f32)
                    acc = contrib if acc is None else acc + contrib
                attn_parts.append(acc)
            attn = jnp.concatenate(attn_parts, axis=0)                   # (B*T, D)
            y = attn + residual                                          # residual inside MHA
            mu = jnp.mean(y, axis=-1, keepdims=True)
            var = jnp.mean(jnp.square(y - mu), axis=-1, keepdims=True)
            mha = (y - mu) * lax.rsqrt(var + LN_EPS) * ln_g_ref[l] + ln_b_ref[l]
            enc = residual + mha                                         # outer residual

        # ---- temporal mean first (block-diagonal pooling matmul), then fc_2 ----
        col = lax.broadcasted_iota(jnp.int32, (b, bbt), 1)
        row = lax.broadcasted_iota(jnp.int32, (b, bbt), 0)
        pool = jnp.where(jnp.logical_and(col >= row * t, col < (row + 1) * t),
                         1.0 / t, 0.0).astype(f32)
        means = jnp.dot(pool, enc, preferred_element_type=f32)           # (B, D)
        out_ref[...] = jnp.dot(means, fc2_w_ref[...],
                               preferred_element_type=f32).astype(out_ref.dtype)

    weights = (
        packed["fc1s_w"], packed["spec_w"], packed["conv_w"], packed["conv_b"],
        packed["w_qkv"], packed["wo"], packed["ln_g"], packed["ln_b"],
        packed["fc2_w"],
    )

    in_specs = [
        pl.BlockSpec((bbt, n_mel), lambda i: (0, 0)),       # mel, pre-flattened to (B*T, C)
        pl.BlockSpec((b, 1, t), lambda i: (0, 0, 0)),       # additive attention bias
    ] + [pl.BlockSpec(w.shape, lambda i, n=w.ndim: (0,) * n) for w in weights]

    out2d = pl.pallas_call(
        kernel,
        out_shape=jax.ShapeDtypeStruct((b, D_MODEL), jnp.float32),
        grid=(1,),
        in_specs=in_specs,
        out_specs=pl.BlockSpec((b, D_MODEL), lambda i: (0, 0)),
        compiler_params=pltpu.CompilerParams(dimension_semantics=("arbitrary",)),
    )(mel2d, attn_bias, *weights)

    return out2d[:, None, :]                                             # (B, 1, D)


def init_params(key):
    """Natural (per-op) parameter layout, mirroring the PyTorch module."""
    ks = jax.random.split(key, 9)
    s = 0.1
    return {
        "fc1_w": s * jax.random.normal(ks[0], (N_MEL, D_MODEL), jnp.float32),
        "spec_w": s * jax.random.normal(ks[1], (N_SPECTRAL, D_MODEL, D_MODEL), jnp.float32),
        # torch Conv1d weight is (out, in, k); stored here transposed as (k, in, out)
        "conv_w": s * jax.random.normal(
            ks[2], (N_TEMPORAL, KERNEL_SIZE, D_MODEL, 2 * D_MODEL), jnp.float32),
        "conv_b": s * jax.random.normal(ks[3], (N_TEMPORAL, 1, 2 * D_MODEL), jnp.float32),
        "wq": s * jax.random.normal(ks[4], (N_ATTN, D_MODEL, N_HEAD * D_K), jnp.float32),
        "wk": s * jax.random.normal(ks[5], (N_ATTN, D_MODEL, N_HEAD * D_K), jnp.float32),
        "wv": s * jax.random.normal(ks[6], (N_ATTN, D_MODEL, N_HEAD * D_V), jnp.float32),
        "wo": s * jax.random.normal(ks[7], (N_ATTN, N_HEAD * D_V, D_MODEL), jnp.float32),
        "ln_g": jnp.ones((N_ATTN, 1, D_MODEL), jnp.float32),   # nn.LayerNorm default init
        "ln_b": jnp.zeros((N_ATTN, 1, D_MODEL), jnp.float32),
        "fc2_w": s * jax.random.normal(ks[8], (D_MODEL, D_MODEL), jnp.float32),
    }


def pack_params(p):
    """One-time host-side weight packing for the fused kernel layout."""
    scale = 1.0 / math.sqrt(D_K)
    # fc_1 has no activation -> fold it into the first spectral layer's weight.
    fc1s_w = p["fc1_w"] @ p["spec_w"][0]                        # (N_MEL, D_MODEL)
    # fused QKV projection with per-head-contiguous [Q_h | K_h | V_h] column blocks;
    # the 1/sqrt(d_k) softmax scale is folded into the Q weights.
    head_blocks = []
    for h in range(N_HEAD):
        head_blocks.append(jnp.concatenate([
            p["wq"][:, :, h * D_K:(h + 1) * D_K] * scale,
            p["wk"][:, :, h * D_K:(h + 1) * D_K],
            p["wv"][:, :, h * D_V:(h + 1) * D_V],
        ], axis=-1))
    w_qkv = jnp.concatenate(head_blocks, axis=-1)               # (L, D, 3D)
    return {
        "fc1s_w": fc1s_w,
        "spec_w": p["spec_w"][1:],                              # remaining spectral layers
        "conv_w": p["conv_w"],                                  # (L, K, D, 2D): per-tap matmuls
        "conv_b": p["conv_b"],
        "w_qkv": w_qkv,
        # split output projection per head: concat-then-fc == sum_h pv_h @ wo[h]
        "wo": p["wo"].reshape(N_ATTN, N_HEAD, D_V, D_MODEL),
        "ln_g": p["ln_g"],
        "ln_b": p["ln_b"],
        "fc2_w": p["fc2_w"],
    }


if __name__ == "__main__":
    key = jax.random.PRNGKey(0)
    k_mel, k_par = jax.random.split(key)

    mel = jax.random.normal(k_mel, (B, T, N_MEL), jnp.float32)
    lens = jnp.array([T, 10], dtype=jnp.int32)                         # valid lengths
    mask = jnp.arange(T, dtype=jnp.int32)[None, :] >= lens[:, None]    # True = padded

    packed = pack_params(init_params(k_par))

    # TODO(synk): dropout is identity (eval-mode forward) and all LinearNorm / MHA fc
    # layers are assumed bias-free; verify against the exact reference checkpoint.
    out = mel_style_encoder(mel, mask, packed)
    out = jax.block_until_ready(out)

    assert out.shape == (B, 1, D_MODEL), out.shape
    assert not bool(jnp.any(jnp.isnan(out))), "NaN in output"
    print("KERNEL_OK")
</pallas_src>

<mosaic_0001>
module attributes {stable_mosaic.version = 11 : i64} {
  func.func @kernel(%arg0: i32, %arg1: memref<32x16xf32, #tpu.memory_space<vmem>>, %arg2: memref<2x1x16xf32, #tpu.memory_space<vmem>>, %arg3: memref<16x32xf32, #tpu.memory_space<vmem>>, %arg4: memref<1x32x32xf32, #tpu.memory_space<vmem>>, %arg5: memref<2x5x32x64xf32, #tpu.memory_space<vmem>>, %arg6: memref<2x1x64xf32, #tpu.memory_space<vmem>>, %arg7: memref<1x32x96xf32, #tpu.memory_space<vmem>>, %arg8: memref<1x2x16x32xf32, #tpu.memory_space<vmem>>, %arg9: memref<1x1x32xf32, #tpu.memory_space<vmem>>, %arg10: memref<1x1x32xf32, #tpu.memory_space<vmem>>, %arg11: memref<32x32xf32, #tpu.memory_space<vmem>>, %arg12: memref<2x32xf32, #tpu.memory_space<vmem>>) attributes {dimension_semantics = [#tpu.dimension_semantics<arbitrary>], iteration_bounds = array<i64: 1>, scalar_prefetch = 0 : i64, scratch_operands = 0 : i64, tpu.core_type = #tpu.core_type<tc>, window_params = [{pipeline_mode = #tpu.pipeline_mode<synchronous>, transform_indices = @transform_0, window_bounds = array<i64: 32, 16>}, {pipeline_mode = #tpu.pipeline_mode<synchronous>, transform_indices = @transform_1, window_bounds = array<i64: 2, 1, 16>}, {pipeline_mode = #tpu.pipeline_mode<synchronous>, transform_indices = @transform_2, window_bounds = array<i64: 16, 32>}, {pipeline_mode = #tpu.pipeline_mode<synchronous>, transform_indices = @transform_3, window_bounds = array<i64: 1, 32, 32>}, {pipeline_mode = #tpu.pipeline_mode<synchronous>, transform_indices = @transform_4, window_bounds = array<i64: 2, 5, 32, 64>}, {pipeline_mode = #tpu.pipeline_mode<synchronous>, transform_indices = @transform_5, window_bounds = array<i64: 2, 1, 64>}, {pipeline_mode = #tpu.pipeline_mode<synchronous>, transform_indices = @transform_6, window_bounds = array<i64: 1, 32, 96>}, {pipeline_mode = #tpu.pipeline_mode<synchronous>, transform_indices = @transform_7, window_bounds = array<i64: 1, 2, 16, 32>}, {pipeline_mode = #tpu.pipeline_mode<synchronous>, transform_indices = @transform_8, window_bounds = array<i64: 1, 1, 32>}, {pipeline_mode = #tpu.pipeline_mode<synchronous>, transform_indices = @transform_9, window_bounds = array<i64: 1, 1, 32>}, {pipeline_mode = #tpu.pipeline_mode<synchronous>, transform_indices = @transform_10, window_bounds = array<i64: 32, 32>}, {pipeline_mode = #tpu.pipeline_mode<synchronous>, transform_indices = @transform_11, window_bounds = array<i64: 2, 32>}]} {
    %c0 = arith.constant 0 : index
    %c0_0 = arith.constant 0 : index
    %0 = vector.load %arg1[%c0, %c0_0] : memref<32x16xf32, #tpu.memory_space<vmem>>, vector<32x16xf32>
    %c0_1 = arith.constant 0 : index
    %c0_2 = arith.constant 0 : index
    %1 = vector.load %arg3[%c0_1, %c0_2] : memref<16x32xf32, #tpu.memory_space<vmem>>, vector<16x32xf32>
    %cst = arith.constant dense<0.000000e+00> : vector<32x32xf32>
    %2 = tpu.matmul %0, %1, %cst {dimension_numbers = #tpu.dot_dimension_numbers<[1], [0], [0], [1], [0, 0, 1, 1], [], []>} : vector<32x16xf32>, vector<16x32xf32>, vector<32x32xf32> -> vector<32x32xf32>
    %cst_3 = arith.constant 0.000000e+00 : f32
    %3 = vector.broadcast %cst_3 : f32 to vector<32x32xf32>
    %4 = arith.maximumf %2, %3 : vector<32x32xf32>
    %5 = vector.broadcast %cst_3 : f32 to vector<32x32xf32>
    %6 = arith.subf %2, %5 : vector<32x32xf32>
    %7 = arith.cmpf one, %6, %6 : vector<32x32xf32>
    %8 = vector.broadcast %cst_3 : f32 to vector<32x32xf32>
    %9 = arith.addf %2, %8 : vector<32x32xf32>
    %10 = math.absf %6 : vector<32x32xf32>
    %cst_4 = arith.constant 0.000000e+00 : f32
    %11 = vector.broadcast %cst_4 : f32 to vector<32x32xf32>
    %12 = arith.subf %11, %10 : vector<32x32xf32>
    %13 = math.exp %12 : vector<32x32xf32>
    %14 = math.log1p %13 : vector<32x32xf32>
    %15 = arith.addf %4, %14 : vector<32x32xf32>
    %16 = arith.select %7, %9, %15 : vector<32x32xi1>, vector<32x32xf32>
    %17 = math.tanh %16 : vector<32x32xf32>
    %18 = arith.mulf %2, %17 : vector<32x32xf32>
    %c0_5 = arith.constant 0 : index
    %c0_6 = arith.constant 0 : index
    %c0_7 = arith.constant 0 : index
    %19 = vector.load %arg4[%c0_5, %c0_6, %c0_7] : memref<1x32x32xf32, #tpu.memory_space<vmem>>, vector<1x32x32xf32>
    %20 = vector.shape_cast %19 : vector<1x32x32xf32> to vector<32x32xf32>
    %cst_8 = arith.constant dense<0.000000e+00> : vector<32x32xf32>
    %21 = tpu.matmul %18, %20, %cst_8 {dimension_numbers = #tpu.dot_dimension_numbers<[1], [0], [0], [1], [0, 0, 1, 1], [], []>} : vector<32x32xf32>, vector<32x32xf32>, vector<32x32xf32> -> vector<32x32xf32>
    %cst_9 = arith.constant 0.000000e+00 : f32
    %22 = vector.broadcast %cst_9 : f32 to vector<32x32xf32>
    %23 = arith.maximumf %21, %22 : vector<32x32xf32>
    %24 = vector.broadcast %cst_9 : f32 to vector<32x32xf32>
    %25 = arith.subf %21, %24 : vector<32x32xf32>
    %26 = arith.cmpf one, %25, %25 : vector<32x32xf32>
    %27 = vector.broadcast %cst_9 : f32 to vector<32x32xf32>
    %28 = arith.addf %21, %27 : vector<32x32xf32>
    %29 = math.absf %25 : vector<32x32xf32>
    %cst_10 = arith.constant 0.000000e+00 : f32
    %30 = vector.broadcast %cst_10 : f32 to vector<32x32xf32>
    %31 = arith.subf %30, %29 : vector<32x32xf32>
    %32 = math.exp %31 : vector<32x32xf32>
    %33 = math.log1p %32 : vector<32x32xf32>
    %34 = arith.addf %23, %33 : vector<32x32xf32>
    %35 = arith.select %26, %28, %34 : vector<32x32xi1>, vector<32x32xf32>
    %36 = math.tanh %35 : vector<32x32xf32>
    %37 = arith.mulf %21, %36 : vector<32x32xf32>
    %38 = tpu.iota {dimensions = array<i32: 0>} : vector<32x1xi32>
    %c0_i32 = arith.constant 0 : i32
    %39 = vector.broadcast %c0_i32 : i32 to vector<32x1xi32>
    %c16_i32 = arith.constant 16 : i32
    %40 = vector.broadcast %c16_i32 : i32 to vector<32x1xi32>
    %41 = arith.cmpi sge, %38, %40 : vector<32x1xi32>
    %c16_i32_11 = arith.constant 16 : i32
    %c0_i32_12 = arith.constant 0 : i32
    %42 = vector.broadcast %c16_i32_11 : i32 to vector<32x1xi32>
    %43 = vector.broadcast %c0_i32_12 : i32 to vector<32x1xi32>
    %44 = arith.select %41, %42, %43 : vector<32x1xi1>, vector<32x1xi32>
    %45 = arith.addi %39, %44 : vector<32x1xi32>
    %46 = arith.subi %38, %45 : vector<32x1xi32>
    %c-2_i32 = arith.constant -2 : i32
    %47 = vector.broadcast %c-2_i32 : i32 to vector<32x1xi32>
    %48 = arith.addi %46, %47 : vector<32x1xi32>
    %c0_i32_13 = arith.constant 0 : i32
    %49 = vector.broadcast %c0_i32_13 : i32 to vector<32x1xi32>
    %50 = arith.cmpi sge, %48, %49 : vector<32x1xi32>
    %c-2_i32_14 = arith.constant -2 : i32
    %51 = vector.broadcast %c-2_i32_14 : i32 to vector<32x1xi32>
    %52 = arith.addi %46, %51 : vector<32x1xi32>
    %c16_i32_15 = arith.constant 16 : i32
    %53 = vector.broadcast %c16_i32_15 : i32 to vector<32x1xi32>
    %54 = arith.cmpi slt, %52, %53 : vector<32x1xi32>
    %55 = arith.andi %50, %54 : vector<32x1xi1>
    %c-1_i32 = arith.constant -1 : i32
    %56 = vector.broadcast %c-1_i32 : i32 to vector<32x1xi32>
    %57 = arith.addi %46, %56 : vector<32x1xi32>
    %c0_i32_16 = arith.constant 0 : i32
    %58 = vector.broadcast %c0_i32_16 : i32 to vector<32x1xi32>
    %59 = arith.cmpi sge, %57, %58 : vector<32x1xi32>
    %c-1_i32_17 = arith.constant -1 : i32
    %60 = vector.broadcast %c-1_i32_17 : i32 to vector<32x1xi32>
    %61 = arith.addi %46, %60 : vector<32x1xi32>
    %c16_i32_18 = arith.constant 16 : i32
    %62 = vector.broadcast %c16_i32_18 : i32 to vector<32x1xi32>
    %63 = arith.cmpi slt, %61, %62 : vector<32x1xi32>
    %64 = arith.andi %59, %63 : vector<32x1xi1>
    %c1_i32 = arith.constant 1 : i32
    %65 = vector.broadcast %c1_i32 : i32 to vector<32x1xi32>
    %66 = arith.addi %46, %65 : vector<32x1xi32>
    %c0_i32_19 = arith.constant 0 : i32
    %67 = vector.broadcast %c0_i32_19 : i32 to vector<32x1xi32>
    %68 = arith.cmpi sge, %66, %67 : vector<32x1xi32>
    %c1_i32_20 = arith.constant 1 : i32
    %69 = vector.broadcast %c1_i32_20 : i32 to vector<32x1xi32>
    %70 = arith.addi %46, %69 : vector<32x1xi32>
    %c16_i32_21 = arith.constant 16 : i32
    %71 = vector.broadcast %c16_i32_21 : i32 to vector<32x1xi32>
    %72 = arith.cmpi slt, %70, %71 : vector<32x1xi32>
    %73 = arith.andi %68, %72 : vector<32x1xi1>
    %c2_i32 = arith.constant 2 : i32
    %74 = vector.broadcast %c2_i32 : i32 to vector<32x1xi32>
    %75 = arith.addi %46, %74 : vector<32x1xi32>
    %c0_i32_22 = arith.constant 0 : i32
    %76 = vector.broadcast %c0_i32_22 : i32 to vector<32x1xi32>
    %77 = arith.cmpi sge, %75, %76 : vector<32x1xi32>
    %c2_i32_23 = arith.constant 2 : i32
    %78 = vector.broadcast %c2_i32_23 : i32 to vector<32x1xi32>
    %79 = arith.addi %46, %78 : vector<32x1xi32>
    %c16_i32_24 = arith.constant 16 : i32
    %80 = vector.broadcast %c16_i32_24 : i32 to vector<32x1xi32>
    %81 = arith.cmpi slt, %79, %80 : vector<32x1xi32>
    %82 = arith.andi %77, %81 : vector<32x1xi1>
    %c0_25 = arith.constant 0 : index
    %c2 = arith.constant 2 : index
    %c0_26 = arith.constant 0 : index
    %c0_27 = arith.constant 0 : index
    %83 = vector.load %arg5[%c0_25, %c2, %c0_26, %c0_27] : memref<2x5x32x64xf32, #tpu.memory_space<vmem>>, vector<1x1x32x64xf32>
    %84 = vector.shape_cast %83 : vector<1x1x32x64xf32> to vector<32x64xf32>
    %cst_28 = arith.constant dense<0.000000e+00> : vector<32x64xf32>
    %85 = tpu.matmul %37, %84, %cst_28 {dimension_numbers = #tpu.dot_dimension_numbers<[1], [0], [0], [1], [0, 0, 1, 1], [], []>} : vector<32x32xf32>, vector<32x64xf32>, vector<32x64xf32> -> vector<32x64xf32>
    %c2_i32_29 = arith.constant 2 : i32
    %86 = tpu.dynamic_rotate %37 by %c2_i32_29 dim 0 : vector<32x32xf32>, i32 -> vector<32x32xf32>
    %cst_30 = arith.constant 0.000000e+00 : f32
    %87 = vector.shape_cast %55 : vector<32x1xi1> to vector<32x1xi1>
    %88 = vector.broadcast %87 : vector<32x1xi1> to vector<32x32xi1>
    %89 = vector.broadcast %cst_30 : f32 to vector<32x32xf32>
    %90 = arith.select %88, %86, %89 : vector<32x32xi1>, vector<32x32xf32>
    %c0_31 = arith.constant 0 : index
    %c0_32 = arith.constant 0 : index
    %c0_33 = arith.constant 0 : index
    %c0_34 = arith.constant 0 : index
    %91 = vector.load %arg5[%c0_31, %c0_32, %c0_33, %c0_34] : memref<2x5x32x64xf32, #tpu.memory_space<vmem>>, vector<1x1x32x64xf32>
    %92 = vector.shape_cast %91 : vector<1x1x32x64xf32> to vector<32x64xf32>
    %cst_35 = arith.constant dense<0.000000e+00> : vector<32x64xf32>
    %93 = tpu.matmul %90, %92, %cst_35 {dimension_numbers = #tpu.dot_dimension_numbers<[1], [0], [0], [1], [0, 0, 1, 1], [], []>} : vector<32x32xf32>, vector<32x64xf32>, vector<32x64xf32> -> vector<32x64xf32>
    %94 = arith.addf %85, %93 : vector<32x64xf32>
    %c1_i32_36 = arith.constant 1 : i32
    %95 = tpu.dynamic_rotate %37 by %c1_i32_36 dim 0 : vector<32x32xf32>, i32 -> vector<32x32xf32>
    %cst_37 = arith.constant 0.000000e+00 : f32
    %96 = vector.shape_cast %64 : vector<32x1xi1> to vector<32x1xi1>
    %97 = vector.broadcast %96 : vector<32x1xi1> to vector<32x32xi1>
    %98 = vector.broadcast %cst_37 : f32 to vector<32x32xf32>
    %99 = arith.select %97, %95, %98 : vector<32x32xi1>, vector<32x32xf32>
    %c0_38 = arith.constant 0 : index
    %c1 = arith.constant 1 : index
    %c0_39 = arith.constant 0 : index
    %c0_40 = arith.constant 0 : index
    %100 = vector.load %arg5[%c0_38, %c1, %c0_39, %c0_40] : memref<2x5x32x64xf32, #tpu.memory_space<vmem>>, vector<1x1x32x64xf32>
    %101 = vector.shape_cast %100 : vector<1x1x32x64xf32> to vector<32x64xf32>
    %cst_41 = arith.constant dense<0.000000e+00> : vector<32x64xf32>
    %102 = tpu.matmul %99, %101, %cst_41 {dimension_numbers = #tpu.dot_dimension_numbers<[1], [0], [0], [1], [0, 0, 1, 1], [], []>} : vector<32x32xf32>, vector<32x64xf32>, vector<32x64xf32> -> vector<32x64xf32>
    %103 = arith.addf %94, %102 : vector<32x64xf32>
    %c31_i32 = arith.constant 31 : i32
    %104 = tpu.dynamic_rotate %37 by %c31_i32 dim 0 : vector<32x32xf32>, i32 -> vector<32x32xf32>
    %cst_42 = arith.constant 0.000000e+00 : f32
    %105 = vector.shape_cast %73 : vector<32x1xi1> to vector<32x1xi1>
    %106 = vector.broadcast %105 : vector<32x1xi1> to vector<32x32xi1>
    %107 = vector.broadcast %cst_42 : f32 to vector<32x32xf32>
    %108 = arith.select %106, %104, %107 : vector<32x32xi1>, vector<32x32xf32>
    %c0_43 = arith.constant 0 : index
    %c3 = arith.constant 3 : index
    %c0_44 = arith.constant 0 : index
    %c0_45 = arith.constant 0 : index
    %109 = vector.load %arg5[%c0_43, %c3, %c0_44, %c0_45] : memref<2x5x32x64xf32, #tpu.memory_space<vmem>>, vector<1x1x32x64xf32>
    %110 = vector.shape_cast %109 : vector<1x1x32x64xf32> to vector<32x64xf32>
    %cst_46 = arith.constant dense<0.000000e+00> : vector<32x64xf32>
    %111 = tpu.matmul %108, %110, %cst_46 {dimension_numbers = #tpu.dot_dimension_numbers<[1], [0], [0], [1], [0, 0, 1, 1], [], []>} : vector<32x32xf32>, vector<32x64xf32>, vector<32x64xf32> -> vector<32x64xf32>
    %112 = arith.addf %103, %111 : vector<32x64xf32>
    %c30_i32 = arith.constant 30 : i32
    %113 = tpu.dynamic_rotate %37 by %c30_i32 dim 0 : vector<32x32xf32>, i32 -> vector<32x32xf32>
    %cst_47 = arith.constant 0.000000e+00 : f32
    %114 = vector.shape_cast %82 : vector<32x1xi1> to vector<32x1xi1>
    %115 = vector.broadcast %114 : vector<32x1xi1> to vector<32x32xi1>
    %116 = vector.broadcast %cst_47 : f32 to vector<32x32xf32>
    %117 = arith.select %115, %113, %116 : vector<32x32xi1>, vector<32x32xf32>
    %c0_48 = arith.constant 0 : index
    %c4 = arith.constant 4 : index
    %c0_49 = arith.constant 0 : index
    %c0_50 = arith.constant 0 : index
    %118 = vector.load %arg5[%c0_48, %c4, %c0_49, %c0_50] : memref<2x5x32x64xf32, #tpu.memory_space<vmem>>, vector<1x1x32x64xf32>
    %119 = vector.shape_cast %118 : vector<1x1x32x64xf32> to vector<32x64xf32>
    %cst_51 = arith.constant dense<0.000000e+00> : vector<32x64xf32>
    %120 = tpu.matmul %117, %119, %cst_51 {dimension_numbers = #tpu.dot_dimension_numbers<[1], [0], [0], [1], [0, 0, 1, 1], [], []>} : vector<32x32xf32>, vector<32x64xf32>, vector<32x64xf32> -> vector<32x64xf32>
    %121 = arith.addf %112, %120 : vector<32x64xf32>
    %c0_52 = arith.constant 0 : index
    %c0_53 = arith.constant 0 : index
    %c0_54 = arith.constant 0 : index
    %122 = vector.load %arg6[%c0_52, %c0_53, %c0_54] : memref<2x1x64xf32, #tpu.memory_space<vmem>>, vector<1x1x64xf32>
    %123 = vector.shape_cast %122 : vector<1x1x64xf32> to vector<1x64xf32>
    %124 = vector.broadcast %123 : vector<1x64xf32> to vector<32x64xf32>
    %125 = arith.addf %121, %124 : vector<32x64xf32>
    %cst_55 = arith.constant 0.000000e+00 : f32
    %126 = vector.broadcast %cst_55 : f32 to vector<32x64xf32>
    %127 = arith.maximumf %125, %126 : vector<32x64xf32>
    %128 = vector.broadcast %cst_55 : f32 to vector<32x64xf32>
    %129 = arith.subf %125, %128 : vector<32x64xf32>
    %130 = arith.cmpf one, %129, %129 : vector<32x64xf32>
    %131 = vector.broadcast %cst_55 : f32 to vector<32x64xf32>
    %132 = arith.addf %125, %131 : vector<32x64xf32>
    %133 = math.absf %129 : vector<32x64xf32>
    %cst_56 = arith.constant 0.000000e+00 : f32
    %134 = vector.broadcast %cst_56 : f32 to vector<32x64xf32>
    %135 = arith.subf %134, %133 : vector<32x64xf32>
    %136 = math.exp %135 : vector<32x64xf32>
    %137 = math.log1p %136 : vector<32x64xf32>
    %138 = arith.addf %127, %137 : vector<32x64xf32>
    %139 = arith.select %130, %132, %138 : vector<32x64xi1>, vector<32x64xf32>
    %140 = math.tanh %139 : vector<32x64xf32>
    %141 = arith.mulf %125, %140 : vector<32x64xf32>
    %142 = vector.extract_strided_slice %141 {offsets = [0, 0], sizes = [32, 32], strides = [1, 1]} : vector<32x64xf32> to vector<32x32xf32>
    %143 = vector.extract_strided_slice %141 {offsets = [0, 32], sizes = [32, 32], strides = [1, 1]} : vector<32x64xf32> to vector<32x32xf32>
    %144 = arith.negf %143 : vector<32x32xf32>
    %145 = math.exp %144 : vector<32x32xf32>
    %cst_57 = arith.constant 1.000000e+00 : f32
    %146 = vector.broadcast %cst_57 : f32 to vector<32x32xf32>
    %147 = arith.addf %146, %145 : vector<32x32xf32>
    %148 = arith.divf %146, %147 : vector<32x32xf32>
    %149 = arith.mulf %142, %148 : vector<32x32xf32>
    %150 = arith.addf %37, %149 : vector<32x32xf32>
    %c1_58 = arith.constant 1 : index
    %c2_59 = arith.constant 2 : index
    %c0_60 = arith.constant 0 : index
    %c0_61 = arith.constant 0 : index
    %151 = vector.load %arg5[%c1_58, %c2_59, %c0_60, %c0_61] : memref<2x5x32x64xf32, #tpu.memory_space<vmem>>, vector<1x1x32x64xf32>
    %152 = vector.shape_cast %151 : vector<1x1x32x64xf32> to vector<32x64xf32>
    %cst_62 = arith.constant dense<0.000000e+00> : vector<32x64xf32>
    %153 = tpu.matmul %150, %152, %cst_62 {dimension_numbers = #tpu.dot_dimension_numbers<[1], [0], [0], [1], [0, 0, 1, 1], [], []>} : vector<32x32xf32>, vector<32x64xf32>, vector<32x64xf32> -> vector<32x64xf32>
    %c2_i32_63 = arith.constant 2 : i32
    %154 = tpu.dynamic_rotate %150 by %c2_i32_63 dim 0 : vector<32x32xf32>, i32 -> vector<32x32xf32>
    %cst_64 = arith.constant 0.000000e+00 : f32
    %155 = vector.shape_cast %55 : vector<32x1xi1> to vector<32x1xi1>
    %156 = vector.broadcast %155 : vector<32x1xi1> to vector<32x32xi1>
    %157 = vector.broadcast %cst_64 : f32 to vector<32x32xf32>
    %158 = arith.select %156, %154, %157 : vector<32x32xi1>, vector<32x32xf32>
    %c1_65 = arith.constant 1 : index
    %c0_66 = arith.constant 0 : index
    %c0_67 = arith.constant 0 : index
    %c0_68 = arith.constant 0 : index
    %159 = vector.load %arg5[%c1_65, %c0_66, %c0_67, %c0_68] : memref<2x5x32x64xf32, #tpu.memory_space<vmem>>, vector<1x1x32x64xf32>
    %160 = vector.shape_cast %159 : vector<1x1x32x64xf32> to vector<32x64xf32>
    %cst_69 = arith.constant dense<0.000000e+00> : vector<32x64xf32>
    %161 = tpu.matmul %158, %160, %cst_69 {dimension_numbers = #tpu.dot_dimension_numbers<[1], [0], [0], [1], [0, 0, 1, 1], [], []>} : vector<32x32xf32>, vector<32x64xf32>, vector<32x64xf32> -> vector<32x64xf32>
    %162 = arith.addf %153, %161 : vector<32x64xf32>
    %c1_i32_70 = arith.constant 1 : i32
    %163 = tpu.dynamic_rotate %150 by %c1_i32_70 dim 0 : vector<32x32xf32>, i32 -> vector<32x32xf32>
    %cst_71 = arith.constant 0.000000e+00 : f32
    %164 = vector.shape_cast %64 : vector<32x1xi1> to vector<32x1xi1>
    %165 = vector.broadcast %164 : vector<32x1xi1> to vector<32x32xi1>
    %166 = vector.broadcast %cst_71 : f32 to vector<32x32xf32>
    %167 = arith.select %165, %163, %166 : vector<32x32xi1>, vector<32x32xf32>
    %c1_72 = arith.constant 1 : index
    %c1_73 = arith.constant 1 : index
    %c0_74 = arith.constant 0 : index
    %c0_75 = arith.constant 0 : index
    %168 = vector.load %arg5[%c1_72, %c1_73, %c0_74, %c0_75] : memref<2x5x32x64xf32, #tpu.memory_space<vmem>>, vector<1x1x32x64xf32>
    %169 = vector.shape_cast %168 : vector<1x1x32x64xf32> to vector<32x64xf32>
    %cst_76 = arith.constant dense<0.000000e+00> : vector<32x64xf32>
    %170 = tpu.matmul %167, %169, %cst_76 {dimension_numbers = #tpu.dot_dimension_numbers<[1], [0], [0], [1], [0, 0, 1, 1], [], []>} : vector<32x32xf32>, vector<32x64xf32>, vector<32x64xf32> -> vector<32x64xf32>
    %171 = arith.addf %162, %170 : vector<32x64xf32>
    %c31_i32_77 = arith.constant 31 : i32
    %172 = tpu.dynamic_rotate %150 by %c31_i32_77 dim 0 : vector<32x32xf32>, i32 -> vector<32x32xf32>
    %cst_78 = arith.constant 0.000000e+00 : f32
    %173 = vector.shape_cast %73 : vector<32x1xi1> to vector<32x1xi1>
    %174 = vector.broadcast %173 : vector<32x1xi1> to vector<32x32xi1>
    %175 = vector.broadcast %cst_78 : f32 to vector<32x32xf32>
    %176 = arith.select %174, %172, %175 : vector<32x32xi1>, vector<32x32xf32>
    %c1_79 = arith.constant 1 : index
    %c3_80 = arith.constant 3 : index
    %c0_81 = arith.constant 0 : index
    %c0_82 = arith.constant 0 : index
    %177 = vector.load %arg5[%c1_79, %c3_80, %c0_81, %c0_82] : memref<2x5x32x64xf32, #tpu.memory_space<vmem>>, vector<1x1x32x64xf32>
    %178 = vector.shape_cast %177 : vector<1x1x32x64xf32> to vector<32x64xf32>
    %cst_83 = arith.constant dense<0.000000e+00> : vector<32x64xf32>
    %179 = tpu.matmul %176, %178, %cst_83 {dimension_numbers = #tpu.dot_dimension_numbers<[1], [0], [0], [1], [0, 0, 1, 1], [], []>} : vector<32x32xf32>, vector<32x64xf32>, vector<32x64xf32> -> vector<32x64xf32>
    %180 = arith.addf %171, %179 : vector<32x64xf32>
    %c30_i32_84 = arith.constant 30 : i32
    %181 = tpu.dynamic_rotate %150 by %c30_i32_84 dim 0 : vector<32x32xf32>, i32 -> vector<32x32xf32>
    %cst_85 = arith.constant 0.000000e+00 : f32
    %182 = vector.shape_cast %82 : vector<32x1xi1> to vector<32x1xi1>
    %183 = vector.broadcast %182 : vector<32x1xi1> to vector<32x32xi1>
    %184 = vector.broadcast %cst_85 : f32 to vector<32x32xf32>
    %185 = arith.select %183, %181, %184 : vector<32x32xi1>, vector<32x32xf32>
    %c1_86 = arith.constant 1 : index
    %c4_87 = arith.constant 4 : index
    %c0_88 = arith.constant 0 : index
    %c0_89 = arith.constant 0 : index
    %186 = vector.load %arg5[%c1_86, %c4_87, %c0_88, %c0_89] : memref<2x5x32x64xf32, #tpu.memory_space<vmem>>, vector<1x1x32x64xf32>
    %187 = vector.shape_cast %186 : vector<1x1x32x64xf32> to vector<32x64xf32>
    %cst_90 = arith.constant dense<0.000000e+00> : vector<32x64xf32>
    %188 = tpu.matmul %185, %187, %cst_90 {dimension_numbers = #tpu.dot_dimension_numbers<[1], [0], [0], [1], [0, 0, 1, 1], [], []>} : vector<32x32xf32>, vector<32x64xf32>, vector<32x64xf32> -> vector<32x64xf32>
    %189 = arith.addf %180, %188 : vector<32x64xf32>
    %c1_91 = arith.constant 1 : index
    %c0_92 = arith.constant 0 : index
    %c0_93 = arith.constant 0 : index
    %190 = vector.load %arg6[%c1_91, %c0_92, %c0_93] : memref<2x1x64xf32, #tpu.memory_space<vmem>>, vector<1x1x64xf32>
    %191 = vector.shape_cast %190 : vector<1x1x64xf32> to vector<1x64xf32>
    %192 = vector.broadcast %191 : vector<1x64xf32> to vector<32x64xf32>
    %193 = arith.addf %189, %192 : vector<32x64xf32>
    %cst_94 = arith.constant 0.000000e+00 : f32
    %194 = vector.broadcast %cst_94 : f32 to vector<32x64xf32>
    %195 = arith.maximumf %193, %194 : vector<32x64xf32>
    %196 = vector.broadcast %cst_94 : f32 to vector<32x64xf32>
    %197 = arith.subf %193, %196 : vector<32x64xf32>
    %198 = arith.cmpf one, %197, %197 : vector<32x64xf32>
    %199 = vector.broadcast %cst_94 : f32 to vector<32x64xf32>
    %200 = arith.addf %193, %199 : vector<32x64xf32>
    %201 = math.absf %197 : vector<32x64xf32>
    %cst_95 = arith.constant 0.000000e+00 : f32
    %202 = vector.broadcast %cst_95 : f32 to vector<32x64xf32>
    %203 = arith.subf %202, %201 : vector<32x64xf32>
    %204 = math.exp %203 : vector<32x64xf32>
    %205 = math.log1p %204 : vector<32x64xf32>
    %206 = arith.addf %195, %205 : vector<32x64xf32>
    %207 = arith.select %198, %200, %206 : vector<32x64xi1>, vector<32x64xf32>
    %208 = math.tanh %207 : vector<32x64xf32>
    %209 = arith.mulf %193, %208 : vector<32x64xf32>
    %210 = vector.extract_strided_slice %209 {offsets = [0, 0], sizes = [32, 32], strides = [1, 1]} : vector<32x64xf32> to vector<32x32xf32>
    %211 = vector.extract_strided_slice %209 {offsets = [0, 32], sizes = [32, 32], strides = [1, 1]} : vector<32x64xf32> to vector<32x32xf32>
    %212 = arith.negf %211 : vector<32x32xf32>
    %213 = math.exp %212 : vector<32x32xf32>
    %cst_96 = arith.constant 1.000000e+00 : f32
    %214 = vector.broadcast %cst_96 : f32 to vector<32x32xf32>
    %215 = arith.addf %214, %213 : vector<32x32xf32>
    %216 = arith.divf %214, %215 : vector<32x32xf32>
    %217 = arith.mulf %210, %216 : vector<32x32xf32>
    %218 = arith.addf %150, %217 : vector<32x32xf32>
    %c0_97 = arith.constant 0 : index
    %c0_98 = arith.constant 0 : index
    %c0_99 = arith.constant 0 : index
    %219 = vector.load %arg2[%c0_97, %c0_98, %c0_99] : memref<2x1x16xf32, #tpu.memory_space<vmem>>, vector<1x1x16xf32>
    %220 = vector.shape_cast %219 : vector<1x1x16xf32> to vector<1x16xf32>
    %c1_100 = arith.constant 1 : index
    %c0_101 = arith.constant 0 : index
    %c0_102 = arith.constant 0 : index
    %221 = vector.load %arg2[%c1_100, %c0_101, %c0_102] : memref<2x1x16xf32, #tpu.memory_space<vmem>>, vector<1x1x16xf32>
    %222 = vector.shape_cast %221 : vector<1x1x16xf32> to vector<1x16xf32>
    %c0_103 = arith.constant 0 : index
    %c0_104 = arith.constant 0 : index
    %c0_105 = arith.constant 0 : index
    %223 = vector.load %arg7[%c0_103, %c0_104, %c0_105] : memref<1x32x96xf32, #tpu.memory_space<vmem>>, vector<1x32x96xf32>
    %224 = vector.shape_cast %223 : vector<1x32x96xf32> to vector<32x96xf32>
    %cst_106 = arith.constant dense<0.000000e+00> : vector<32x96xf32>
    %225 = tpu.matmul %218, %224, %cst_106 {dimension_numbers = #tpu.dot_dimension_numbers<[1], [0], [0], [1], [0, 0, 1, 1], [], []>} : vector<32x32xf32>, vector<32x96xf32>, vector<32x96xf32> -> vector<32x96xf32>
    %226 = vector.extract_strided_slice %225 {offsets = [0, 0], sizes = [16, 96], strides = [1, 1]} : vector<32x96xf32> to vector<16x96xf32>
    %227 = vector.extract_strided_slice %226 {offsets = [0, 0], sizes = [16, 48], strides = [1, 1]} : vector<16x96xf32> to vector<16x48xf32>
    %228 = vector.extract_strided_slice %227 {offsets = [0, 0], sizes = [16, 16], strides = [1, 1]} : vector<16x48xf32> to vector<16x16xf32>
    %229 = vector.extract_strided_slice %227 {offsets = [0, 16], sizes = [16, 16], strides = [1, 1]} : vector<16x48xf32> to vector<16x16xf32>
    %230 = vector.extract_strided_slice %227 {offsets = [0, 32], sizes = [16, 16], strides = [1, 1]} : vector<16x48xf32> to vector<16x16xf32>
    %cst_107 = arith.constant dense<0.000000e+00> : vector<16x16xf32>
    %231 = tpu.matmul %228, %229, %cst_107 {dimension_numbers = #tpu.dot_dimension_numbers<[1], [1], [0], [0], [0, 0, 1, 0], [], []>} : vector<16x16xf32>, vector<16x16xf32>, vector<16x16xf32> -> vector<16x16xf32>
    %232 = vector.broadcast %220 : vector<1x16xf32> to vector<16x16xf32>
    %233 = arith.addf %231, %232 : vector<16x16xf32>
    %cst_108 = arith.constant dense<0xFF800000> : vector<16xf32>
    %234 = vector.multi_reduction <maximumf>, %233, %cst_108 [1] : vector<16x16xf32> to vector<16xf32>
    %235 = vector.shape_cast %234 : vector<16xf32> to vector<16x1xf32>
    %236 = vector.broadcast %235 : vector<16x1xf32> to vector<16x16xf32>
    %237 = arith.subf %233, %236 : vector<16x16xf32>
    %238 = math.exp %237 : vector<16x16xf32>
    %cst_109 = arith.constant dense<0.000000e+00> : vector<16xf32>
    %239 = vector.multi_reduction <add>, %238, %cst_109 [1] : vector<16x16xf32> to vector<16xf32>
    %240 = vector.shape_cast %239 : vector<16xf32> to vector<16x1xf32>
    %241 = tpu.reciprocal %240 {approx = true} : vector<16x1xf32> -> vector<16x1xf32>
    %242 = vector.broadcast %241 : vector<16x1xf32> to vector<16x16xf32>
    %243 = arith.mulf %238, %242 : vector<16x16xf32>
    %cst_110 = arith.constant dense<0.000000e+00> : vector<16x16xf32>
    %244 = tpu.matmul %243, %230, %cst_110 {dimension_numbers = #tpu.dot_dimension_numbers<[1], [0], [0], [1], [0, 0, 1, 1], [], []>} : vector<16x16xf32>, vector<16x16xf32>, vector<16x16xf32> -> vector<16x16xf32>
    %c0_111 = arith.constant 0 : index
    %c0_112 = arith.constant 0 : index
    %c0_113 = arith.constant 0 : index
    %c0_114 = arith.constant 0 : index
    %245 = vector.load %arg8[%c0_111, %c0_112, %c0_113, %c0_114] : memref<1x2x16x32xf32, #tpu.memory_space<vmem>>, vector<1x1x16x32xf32>
    %246 = vector.shape_cast %245 : vector<1x1x16x32xf32> to vector<16x32xf32>
    %cst_115 = arith.constant dense<0.000000e+00> : vector<16x32xf32>
    %247 = tpu.matmul %244, %246, %cst_115 {dimension_numbers = #tpu.dot_dimension_numbers<[1], [0], [0], [1], [0, 0, 1, 1], [], []>} : vector<16x16xf32>, vector<16x32xf32>, vector<16x32xf32> -> vector<16x32xf32>
    %248 = vector.extract_strided_slice %226 {offsets = [0, 48], sizes = [16, 48], strides = [1, 1]} : vector<16x96xf32> to vector<16x48xf32>
    %249 = vector.extract_strided_slice %248 {offsets = [0, 0], sizes = [16, 16], strides = [1, 1]} : vector<16x48xf32> to vector<16x16xf32>
    %250 = vector.extract_strided_slice %248 {offsets = [0, 16], sizes = [16, 16], strides = [1, 1]} : vector<16x48xf32> to vector<16x16xf32>
    %251 = vector.extract_strided_slice %248 {offsets = [0, 32], sizes = [16, 16], strides = [1, 1]} : vector<16x48xf32> to vector<16x16xf32>
    %cst_116 = arith.constant dense<0.000000e+00> : vector<16x16xf32>
    %252 = tpu.matmul %249, %250, %cst_116 {dimension_numbers = #tpu.dot_dimension_numbers<[1], [1], [0], [0], [0, 0, 1, 0], [], []>} : vector<16x16xf32>, vector<16x16xf32>, vector<16x16xf32> -> vector<16x16xf32>
    %253 = vector.broadcast %220 : vector<1x16xf32> to vector<16x16xf32>
    %254 = arith.addf %252, %253 : vector<16x16xf32>
    %cst_117 = arith.constant dense<0xFF800000> : vector<16xf32>
    %255 = vector.multi_reduction <maximumf>, %254, %cst_117 [1] : vector<16x16xf32> to vector<16xf32>
    %256 = vector.shape_cast %255 : vector<16xf32> to vector<16x1xf32>
    %257 = vector.broadcast %256 : vector<16x1xf32> to vector<16x16xf32>
    %258 = arith.subf %254, %257 : vector<16x16xf32>
    %259 = math.exp %258 : vector<16x16xf32>
    %cst_118 = arith.constant dense<0.000000e+00> : vector<16xf32>
    %260 = vector.multi_reduction <add>, %259, %cst_118 [1] : vector<16x16xf32> to vector<16xf32>
    %261 = vector.shape_cast %260 : vector<16xf32> to vector<16x1xf32>
    %262 = tpu.reciprocal %261 {approx = true} : vector<16x1xf32> -> vector<16x1xf32>
    %263 = vector.broadcast %262 : vector<16x1xf32> to vector<16x16xf32>
    %264 = arith.mulf %259, %263 : vector<16x16xf32>
    %cst_119 = arith.constant dense<0.000000e+00> : vector<16x16xf32>
    %265 = tpu.matmul %264, %251, %cst_119 {dimension_numbers = #tpu.dot_dimension_numbers<[1], [0], [0], [1], [0, 0, 1, 1], [], []>} : vector<16x16xf32>, vector<16x16xf32>, vector<16x16xf32> -> vector<16x16xf32>
    %c0_120 = arith.constant 0 : index
    %c1_121 = arith.constant 1 : index
    %c0_122 = arith.constant 0 : index
    %c0_123 = arith.constant 0 : index
    %266 = vector.load %arg8[%c0_120, %c1_121, %c0_122, %c0_123] : memref<1x2x16x32xf32, #tpu.memory_space<vmem>>, vector<1x1x16x32xf32>
    %267 = vector.shape_cast %266 : vector<1x1x16x32xf32> to vector<16x32xf32>
    %cst_124 = arith.constant dense<0.000000e+00> : vector<16x32xf32>
    %268 = tpu.matmul %265, %267, %cst_124 {dimension_numbers = #tpu.dot_dimension_numbers<[1], [0], [0], [1], [0, 0, 1, 1], [], []>} : vector<16x16xf32>, vector<16x32xf32>, vector<16x32xf32> -> vector<16x32xf32>
    %269 = arith.addf %247, %268 : vector<16x32xf32>
    %270 = vector.extract_strided_slice %225 {offsets = [16, 0], sizes = [16, 96], strides = [1, 1]} : vector<32x96xf32> to vector<16x96xf32>
    %271 = vector.extract_strided_slice %270 {offsets = [0, 0], sizes = [16, 48], strides = [1, 1]} : vector<16x96xf32> to vector<16x48xf32>
    %272 = vector.extract_strided_slice %271 {offsets = [0, 0], sizes = [16, 16], strides = [1, 1]} : vector<16x48xf32> to vector<16x16xf32>
    %273 = vector.extract_strided_slice %271 {offsets = [0, 16], sizes = [16, 16], strides = [1, 1]} : vector<16x48xf32> to vector<16x16xf32>
    %274 = vector.extract_strided_slice %271 {offsets = [0, 32], sizes = [16, 16], strides = [1, 1]} : vector<16x48xf32> to vector<16x16xf32>
    %cst_125 = arith.constant dense<0.000000e+00> : vector<16x16xf32>
    %275 = tpu.matmul %272, %273, %cst_125 {dimension_numbers = #tpu.dot_dimension_numbers<[1], [1], [0], [0], [0, 0, 1, 0], [], []>} : vector<16x16xf32>, vector<16x16xf32>, vector<16x16xf32> -> vector<16x16xf32>
    %276 = vector.broadcast %222 : vector<1x16xf32> to vector<16x16xf32>
    %277 = arith.addf %275, %276 : vector<16x16xf32>
    %cst_126 = arith.constant dense<0xFF800000> : vector<16xf32>
    %278 = vector.multi_reduction <maximumf>, %277, %cst_126 [1] : vector<16x16xf32> to vector<16xf32>
    %279 = vector.shape_cast %278 : vector<16xf32> to vector<16x1xf32>
    %280 = vector.broadcast %279 : vector<16x1xf32> to vector<16x16xf32>
    %281 = arith.subf %277, %280 : vector<16x16xf32>
    %282 = math.exp %281 : vector<16x16xf32>
    %cst_127 = arith.constant dense<0.000000e+00> : vector<16xf32>
    %283 = vector.multi_reduction <add>, %282, %cst_127 [1] : vector<16x16xf32> to vector<16xf32>
    %284 = vector.shape_cast %283 : vector<16xf32> to vector<16x1xf32>
    %285 = tpu.reciprocal %284 {approx = true} : vector<16x1xf32> -> vector<16x1xf32>
    %286 = vector.broadcast %285 : vector<16x1xf32> to vector<16x16xf32>
    %287 = arith.mulf %282, %286 : vector<16x16xf32>
    %cst_128 = arith.constant dense<0.000000e+00> : vector<16x16xf32>
    %288 = tpu.matmul %287, %274, %cst_128 {dimension_numbers = #tpu.dot_dimension_numbers<[1], [0], [0], [1], [0, 0, 1, 1], [], []>} : vector<16x16xf32>, vector<16x16xf32>, vector<16x16xf32> -> vector<16x16xf32>
    %c0_129 = arith.constant 0 : index
    %c0_130 = arith.constant 0 : index
    %c0_131 = arith.constant 0 : index
    %c0_132 = arith.constant 0 : index
    %289 = vector.load %arg8[%c0_129, %c0_130, %c0_131, %c0_132] : memref<1x2x16x32xf32, #tpu.memory_space<vmem>>, vector<1x1x16x32xf32>
    %290 = vector.shape_cast %289 : vector<1x1x16x32xf32> to vector<16x32xf32>
    %cst_133 = arith.constant dense<0.000000e+00> : vector<16x32xf32>
    %291 = tpu.matmul %288, %290, %cst_133 {dimension_numbers = #tpu.dot_dimension_numbers<[1], [0], [0], [1], [0, 0, 1, 1], [], []>} : vector<16x16xf32>, vector<16x32xf32>, vector<16x32xf32> -> vector<16x32xf32>
    %292 = vector.extract_strided_slice %270 {offsets = [0, 48], sizes = [16, 48], strides = [1, 1]} : vector<16x96xf32> to vector<16x48xf32>
    %293 = vector.extract_strided_slice %292 {offsets = [0, 0], sizes = [16, 16], strides = [1, 1]} : vector<16x48xf32> to vector<16x16xf32>
    %294 = vector.extract_strided_slice %292 {offsets = [0, 16], sizes = [16, 16], strides = [1, 1]} : vector<16x48xf32> to vector<16x16xf32>
    %295 = vector.extract_strided_slice %292 {offsets = [0, 32], sizes = [16, 16], strides = [1, 1]} : vector<16x48xf32> to vector<16x16xf32>
    %cst_134 = arith.constant dense<0.000000e+00> : vector<16x16xf32>
    %296 = tpu.matmul %293, %294, %cst_134 {dimension_numbers = #tpu.dot_dimension_numbers<[1], [1], [0], [0], [0, 0, 1, 0], [], []>} : vector<16x16xf32>, vector<16x16xf32>, vector<16x16xf32> -> vector<16x16xf32>
    %297 = vector.broadcast %222 : vector<1x16xf32> to vector<16x16xf32>
    %298 = arith.addf %296, %297 : vector<16x16xf32>
    %cst_135 = arith.constant dense<0xFF800000> : vector<16xf32>
    %299 = vector.multi_reduction <maximumf>, %298, %cst_135 [1] : vector<16x16xf32> to vector<16xf32>
    %300 = vector.shape_cast %299 : vector<16xf32> to vector<16x1xf32>
    %301 = vector.broadcast %300 : vector<16x1xf32> to vector<16x16xf32>
    %302 = arith.subf %298, %301 : vector<16x16xf32>
    %303 = math.exp %302 : vector<16x16xf32>
    %cst_136 = arith.constant dense<0.000000e+00> : vector<16xf32>
    %304 = vector.multi_reduction <add>, %303, %cst_136 [1] : vector<16x16xf32> to vector<16xf32>
    %305 = vector.shape_cast %304 : vector<16xf32> to vector<16x1xf32>
    %306 = tpu.reciprocal %305 {approx = true} : vector<16x1xf32> -> vector<16x1xf32>
    %307 = vector.broadcast %306 : vector<16x1xf32> to vector<16x16xf32>
    %308 = arith.mulf %303, %307 : vector<16x16xf32>
    %cst_137 = arith.constant dense<0.000000e+00> : vector<16x16xf32>
    %309 = tpu.matmul %308, %295, %cst_137 {dimension_numbers = #tpu.dot_dimension_numbers<[1], [0], [0], [1], [0, 0, 1, 1], [], []>} : vector<16x16xf32>, vector<16x16xf32>, vector<16x16xf32> -> vector<16x16xf32>
    %c0_138 = arith.constant 0 : index
    %c1_139 = arith.constant 1 : index
    %c0_140 = arith.constant 0 : index
    %c0_141 = arith.constant 0 : index
    %310 = vector.load %arg8[%c0_138, %c1_139, %c0_140, %c0_141] : memref<1x2x16x32xf32, #tpu.memory_space<vmem>>, vector<1x1x16x32xf32>
    %311 = vector.shape_cast %310 : vector<1x1x16x32xf32> to vector<16x32xf32>
    %cst_142 = arith.constant dense<0.000000e+00> : vector<16x32xf32>
    %312 = tpu.matmul %309, %311, %cst_142 {dimension_numbers = #tpu.dot_dimension_numbers<[1], [0], [0], [1], [0, 0, 1, 1], [], []>} : vector<16x16xf32>, vector<16x32xf32>, vector<16x32xf32> -> vector<16x32xf32>
    %313 = arith.addf %291, %312 : vector<16x32xf32>
    %314 = tpu.concatenate %269, %313 in 0 : vector<16x32xf32>, vector<16x32xf32> -> vector<32x32xf32>
    %315 = arith.addf %314, %218 : vector<32x32xf32>
    %cst_143 = arith.constant dense<0.000000e+00> : vector<32xf32>
    %316 = vector.multi_reduction <add>, %315, %cst_143 [1] : vector<32x32xf32> to vector<32xf32>
    %317 = vector.shape_cast %316 : vector<32xf32> to vector<32x1xf32>
    %cst_144 = arith.constant 3.200000e+01 : f32
    %318 = vector.broadcast %cst_144 : f32 to vector<32x1xf32>
    %319 = arith.divf %317, %318 : vector<32x1xf32>
    %320 = vector.broadcast %319 : vector<32x1xf32> to vector<32x32xf32>
    %321 = arith.subf %315, %320 : vector<32x32xf32>
    %322 = arith.mulf %321, %321 : vector<32x32xf32>
    %cst_145 = arith.constant dense<0.000000e+00> : vector<32xf32>
    %323 = vector.multi_reduction <add>, %322, %cst_145 [1] : vector<32x32xf32> to vector<32xf32>
    %324 = vector.shape_cast %323 : vector<32xf32> to vector<32x1xf32>
    %cst_146 = arith.constant 3.200000e+01 : f32
    %325 = vector.broadcast %cst_146 : f32 to vector<32x1xf32>
    %326 = arith.divf %324, %325 : vector<32x1xf32>
    %327 = vector.broadcast %319 : vector<32x1xf32> to vector<32x32xf32>
    %328 = arith.subf %315, %327 : vector<32x32xf32>
    %cst_147 = arith.constant 9.99999974E-6 : f32
    %329 = vector.broadcast %cst_147 : f32 to vector<32x1xf32>
    %330 = arith.addf %326, %329 : vector<32x1xf32>
    %331 = math.rsqrt %330 : vector<32x1xf32>
    %332 = vector.broadcast %331 : vector<32x1xf32> to vector<32x32xf32>
    %333 = arith.mulf %328, %332 : vector<32x32xf32>
    %c0_148 = arith.constant 0 : index
    %c0_149 = arith.constant 0 : index
    %c0_150 = arith.constant 0 : index
    %334 = vector.load %arg9[%c0_148, %c0_149, %c0_150] : memref<1x1x32xf32, #tpu.memory_space<vmem>>, vector<1x1x32xf32>
    %335 = vector.shape_cast %334 : vector<1x1x32xf32> to vector<1x32xf32>
    %336 = vector.broadcast %335 : vector<1x32xf32> to vector<32x32xf32>
    %337 = arith.mulf %333, %336 : vector<32x32xf32>
    %c0_151 = arith.constant 0 : index
    %c0_152 = arith.constant 0 : index
    %c0_153 = arith.constant 0 : index
    %338 = vector.load %arg10[%c0_151, %c0_152, %c0_153] : memref<1x1x32xf32, #tpu.memory_space<vmem>>, vector<1x1x32xf32>
    %339 = vector.shape_cast %338 : vector<1x1x32xf32> to vector<1x32xf32>
    %340 = vector.broadcast %339 : vector<1x32xf32> to vector<32x32xf32>
    %341 = arith.addf %337, %340 : vector<32x32xf32>
    %342 = arith.addf %218, %341 : vector<32x32xf32>
    %343 = tpu.iota {dimensions = array<i32: 1>} : vector<2x32xi32>
    %344 = tpu.iota {dimensions = array<i32: 0>} : vector<2x32xi32>
    %c16_i32_154 = arith.constant 16 : i32
    %345 = vector.broadcast %c16_i32_154 : i32 to vector<2x32xi32>
    %346 = arith.muli %344, %345 : vector<2x32xi32>
    %347 = arith.cmpi sge, %343, %346 : vector<2x32xi32>
    %c1_i32_155 = arith.constant 1 : i32
    %348 = vector.broadcast %c1_i32_155 : i32 to vector<2x32xi32>
    %349 = arith.addi %344, %348 : vector<2x32xi32>
    %c16_i32_156 = arith.constant 16 : i32
    %350 = vector.broadcast %c16_i32_156 : i32 to vector<2x32xi32>
    %351 = arith.muli %349, %350 : vector<2x32xi32>
    %352 = arith.cmpi slt, %343, %351 : vector<2x32xi32>
    %353 = arith.andi %347, %352 : vector<2x32xi1>
    %cst_157 = arith.constant 6.250000e-02 : f32
    %cst_158 = arith.constant 0.000000e+00 : f32
    %354 = vector.broadcast %cst_157 : f32 to vector<2x32xf32>
    %355 = vector.broadcast %cst_158 : f32 to vector<2x32xf32>
    %356 = arith.select %353, %354, %355 : vector<2x32xi1>, vector<2x32xf32>
    %cst_159 = arith.constant dense<0.000000e+00> : vector<2x32xf32>
    %357 = tpu.matmul %356, %342, %cst_159 {dimension_numbers = #tpu.dot_dimension_numbers<[1], [0], [0], [1], [0, 0, 1, 1], [], []>} : vector<2x32xf32>, vector<32x32xf32>, vector<2x32xf32> -> vector<2x32xf32>
    %c0_160 = arith.constant 0 : index
    %c0_161 = arith.constant 0 : index
    %358 = vector.load %arg11[%c0_160, %c0_161] : memref<32x32xf32, #tpu.memory_space<vmem>>, vector<32x32xf32>
    %cst_162 = arith.constant dense<0.000000e+00> : vector<2x32xf32>
    %359 = tpu.matmul %357, %358, %cst_162 {dimension_numbers = #tpu.dot_dimension_numbers<[1], [0], [0], [1], [0, 0, 1, 1], [], []>} : vector<2x32xf32>, vector<32x32xf32>, vector<2x32xf32> -> vector<2x32xf32>
    %c0_163 = arith.constant 0 : index
    %c0_164 = arith.constant 0 : index
    %360 = vector.load %arg12[%c0_163, %c0_164] : memref<2x32xf32, #tpu.memory_space<vmem>>, vector<2x32xf32>
    tpu.vector_store %arg12[%c0_163, %c0_164], %359 {strides = array<i32>} : memref<2x32xf32, #tpu.memory_space<vmem>>, vector<2x32xf32>,
    return
  }
  func.func @transform_0(%arg0: i32) -> (i32, i32) {
    %c0_i32 = arith.constant 0 : i32
    %c0_i32_0 = arith.constant 0 : i32
    %c0_i32_1 = arith.constant 0 : i32
    return %c0_i32, %c0_i32_0 : i32, i32
  }
  func.func @transform_1(%arg0: i32) -> (i32, i32, i32) {
    %c0_i32 = arith.constant 0 : i32
    %c0_i32_0 = arith.constant 0 : i32
    %c0_i32_1 = arith.constant 0 : i32
    %c0_i32_2 = arith.constant 0 : i32
    return %c0_i32, %c0_i32_0, %c0_i32_1 : i32, i32, i32
  }
  func.func @transform_2(%arg0: i32) -> (i32, i32) {
    %c0_i32 = arith.constant 0 : i32
    %c0_i32_0 = arith.constant 0 : i32
    %c0_i32_1 = arith.constant 0 : i32
    return %c0_i32, %c0_i32_0 : i32, i32
  }
  func.func @transform_3(%arg0: i32) -> (i32, i32, i32) {
    %c0_i32 = arith.constant 0 : i32
    %c0_i32_0 = arith.constant 0 : i32
    %c0_i32_1 = arith.constant 0 : i32
    %c0_i32_2 = arith.constant 0 : i32
    return %c0_i32, %c0_i32_0, %c0_i32_1 : i32, i32, i32
  }
  func.func @transform_4(%arg0: i32) -> (i32, i32, i32, i32) {
    %c0_i32 = arith.constant 0 : i32
    %c0_i32_0 = arith.constant 0 : i32
    %c0_i32_1 = arith.constant 0 : i32
    %c0_i32_2 = arith.constant 0 : i32
    %c0_i32_3 = arith.constant 0 : i32
    return %c0_i32, %c0_i32_0, %c0_i32_1, %c0_i32_2 : i32, i32, i32, i32
  }
  func.func @transform_5(%arg0: i32) -> (i32, i32, i32) {
    %c0_i32 = arith.constant 0 : i32
    %c0_i32_0 = arith.constant 0 : i32
    %c0_i32_1 = arith.constant 0 : i32
    %c0_i32_2 = arith.constant 0 : i32
    return %c0_i32, %c0_i32_0, %c0_i32_1 : i32, i32, i32
  }
  func.func @transform_6(%arg0: i32) -> (i32, i32, i32) {
    %c0_i32 = arith.constant 0 : i32
    %c0_i32_0 = arith.constant 0 : i32
    %c0_i32_1 = arith.constant 0 : i32
    %c0_i32_2 = arith.constant 0 : i32
    return %c0_i32, %c0_i32_0, %c0_i32_1 : i32, i32, i32
  }
  func.func @transform_7(%arg0: i32) -> (i32, i32, i32, i32) {
    %c0_i32 = arith.constant 0 : i32
    %c0_i32_0 = arith.constant 0 : i32
    %c0_i32_1 = arith.constant 0 : i32
    %c0_i32_2 = arith.constant 0 : i32
    %c0_i32_3 = arith.constant 0 : i32
    return %c0_i32, %c0_i32_0, %c0_i32_1, %c0_i32_2 : i32, i32, i32, i32
  }
  func.func @transform_8(%arg0: i32) -> (i32, i32, i32) {
    %c0_i32 = arith.constant 0 : i32
    %c0_i32_0 = arith.constant 0 : i32
    %c0_i32_1 = arith.constant 0 : i32
    %c0_i32_2 = arith.constant 0 : i32
    return %c0_i32, %c0_i32_0, %c0_i32_1 : i32, i32, i32
  }
  func.func @transform_9(%arg0: i32) -> (i32, i32, i32) {
    %c0_i32 = arith.constant 0 : i32
    %c0_i32_0 = arith.constant 0 : i32
    %c0_i32_1 = arith.constant 0 : i32
    %c0_i32_2 = arith.constant 0 : i32
    return %c0_i32, %c0_i32_0, %c0_i32_1 : i32, i32, i32
  }
  func.func @transform_10(%arg0: i32) -> (i32, i32) {
    %c0_i32 = arith.constant 0 : i32
    %c0_i32_0 = arith.constant 0 : i32
    %c0_i32_1 = arith.constant 0 : i32
    return %c0_i32, %c0_i32_0 : i32, i32
  }
  func.func @transform_11(%arg0: i32) -> (i32, i32) {
    %c0_i32 = arith.constant 0 : i32
    %c0_i32_0 = arith.constant 0 : i32
    %c0_i32_1 = arith.constant 0 : i32
    return %c0_i32, %c0_i32_0 : i32, i32
  }
}

</mosaic_0001>

<llo_original>
// kernel: tpu_custom_call.1
$region0: #{tpu_custom_call.1}
  #allocation0 [shape = 'u32[]', space=smem, size = 0x4, offset = 0x4, fixed_abs, tag = 'smem constant byte address 0x4 - core index']
  #allocation1 [shape = 'u32[72,128]{1,0:T(1,128)}', space=vmem, size = 0x9000, scoped, tag = 'internal scratch']
  %s0 = inlined_call_operand.vmem [shape: f32[32,16], index: 0, kind: input, shape index: {}]
  %s1 = inlined_call_operand.vmem [shape: f32[2,1,16], index: 1, kind: input, shape index: {}]
  %s2 = inlined_call_operand.vmem [shape: f32[16,32], index: 2, kind: input, shape index: {}]
  %s3 = inlined_call_operand.vmem [shape: f32[1,32,32], index: 3, kind: input, shape index: {}]
  %s4 = inlined_call_operand.hbm [shape: f32[2,5,32,64], index: 4, kind: input, shape index: {}]
  %s5 = inlined_call_operand.vmem [shape: f32[2,1,64], index: 5, kind: input, shape index: {}]
  %s6 = inlined_call_operand.hbm [shape: f32[1,32,96], index: 6, kind: input, shape index: {}]
  %s7 = inlined_call_operand.hbm [shape: f32[1,2,16,32], index: 7, kind: input, shape index: {}]
  %s8 = inlined_call_operand.vmem [shape: f32[1,1,32], index: 8, kind: input, shape index: {}]
  %s9 = inlined_call_operand.vmem [shape: f32[1,1,32], index: 9, kind: input, shape index: {}]
  %s10 = inlined_call_operand.hbm [shape: f32[32,32], index: 10, kind: input, shape index: {}]
  %s11 = inlined_call_operand.hbm [shape: f32[2,32], index: 11, kind: output, shape index: {}]
  %s12 = sld [smem:[#allocation0]]
  $region70: #{tpu_custom_call.1} parent=0
    _
  %s14 = ssub.s32 1, %s12
  %s15 = scalar_select 0, %s14, %s12
  $region1: #{tpu_custom_call.1} parent=0
    #allocation2 [shape = 'u8[163840]{0}', space=vmem, size = 0x28000, scoped, tag = 'input window, operand 4, single buffered']
    #allocation3 [shape = 's32[1]{0}', space=sflag, size = 0x4, scoped, tag = 'scoped memory for tpu_custom_call.1']
    #allocation4 [shape = 's32[1]{0}', space=sflag, size = 0x4, scoped, tag = 'scoped memory for tpu_custom_call.1']
    #allocation5 [shape = 'u8[16384]{0}', space=vmem, size = 0x4000, scoped, tag = 'input window, operand 6, single buffered']
    #allocation6 [shape = 's32[1]{0}', space=sflag, size = 0x4, scoped, tag = 'scoped memory for tpu_custom_call.1']
    #allocation7 [shape = 'u8[16384]{0}', space=vmem, size = 0x4000, scoped, tag = 'input window, operand 7, single buffered']
    #allocation8 [shape = 'u8[16384]{0}', space=vmem, size = 0x4000, scoped, tag = 'input window, operand 10, single buffered']
    #allocation9 [shape = 's32[1]{0}', space=sflag, size = 0x4, scoped, tag = 'scoped memory for tpu_custom_call.1']
    #allocation10 [shape = 'u8[1024]{0}', space=vmem, size = 0x400, scoped, tag = 'output window, operand 0, single buffered']
    %16 = vsyncpa [#allocation3], 0
    %17 = vsyncpa [#allocation6], 0
    %18 = vsyncpa [#allocation9], 0
    %19 = vsyncpa [#allocation4], 0
    // Predicated region
    $region2: #{tpu_custom_call.1} parent=1 // pred_check
      _
    $region3: #{tpu_custom_call.1} parent=1 // pred_check_branch
      %21 = sbr.rel (0) target = $region5
    $region4: #{tpu_custom_call.1} parent=1 // pred_region
      _
    $region5: #{tpu_custom_call.1} parent=1 // pred_fallthru
      _
    // Predicated region
    $region6: #{tpu_custom_call.1} parent=1 // pred_check
      _
    $region7: #{tpu_custom_call.1} parent=1 // pred_check_branch
      %23 = sbr.rel (0) target = $region9
    $region8: #{tpu_custom_call.1} parent=1 // pred_region
      _
    $region9: #{tpu_custom_call.1} parent=1 // pred_fallthru
      _
    // Predicated region
    $region10: #{tpu_custom_call.1} parent=1 // pred_check
      _
    $region11: #{tpu_custom_call.1} parent=1 // pred_check_branch
      %25 = sbr.rel (0) target = $region13
    $region12: #{tpu_custom_call.1} parent=1 // pred_region
      _
    $region13: #{tpu_custom_call.1} parent=1 // pred_fallthru
      _
    // Predicated region
    $region14: #{tpu_custom_call.1} parent=1 // pred_check
      _
    $region15: #{tpu_custom_call.1} parent=1 // pred_check_branch
      %27 = sbr.rel (0) target = $region17
    $region16: #{tpu_custom_call.1} parent=1 // pred_region
      _
    $region17: #{tpu_custom_call.1} parent=1 // pred_fallthru
      _
    // Predicated region
    $region18: #{tpu_custom_call.1} parent=1 // pred_check
      _
    $region19: #{tpu_custom_call.1} parent=1 // pred_check_branch
      %29 = sbr.rel (0) target = $region21
    $region20: #{tpu_custom_call.1} parent=1 // pred_region
      %31 = vsyncadd [#allocation3], 0
      %s32 = sshll.u32 %s4, 4
      %s33 = int_to_ptr.hbm [resolvable:$true] %s32
      %s34 = sshll.u32 [#allocation2], 4
      %s35 = int_to_ptr.vmem [resolvable:$true] %s34
      %40 = dma.hbm_to_vmem [thread:$0]  %s33, 5120, %s35, [#allocation3], 128, 128, 8
    $region21: #{tpu_custom_call.1} parent=1 // pred_fallthru
      _
    // Predicated region
    $region22: #{tpu_custom_call.1} parent=1 // pred_check
      _
    $region23: #{tpu_custom_call.1} parent=1 // pred_check_branch
      %42 = sbr.rel (0) target = $region25
    $region24: #{tpu_custom_call.1} parent=1 // pred_region
      _
    $region25: #{tpu_custom_call.1} parent=1 // pred_fallthru
      _
    // Predicated region
    $region26: #{tpu_custom_call.1} parent=1 // pred_check
      _
    $region27: #{tpu_custom_call.1} parent=1 // pred_check_branch
      %44 = sbr.rel (0) target = $region29
    $region28: #{tpu_custom_call.1} parent=1 // pred_region
      %46 = vsyncadd [#allocation6], 0
      %s47 = sshll.u32 %s6, 4
      %s48 = int_to_ptr.hbm [resolvable:$true] %s47
      %s49 = sshll.u32 [#allocation5], 4
      %s50 = int_to_ptr.vmem [resolvable:$true] %s49
      %55 = dma.hbm_to_vmem [thread:$0]  %s48, 512, %s50, [#allocation6], 128, 128, 8
    $region29: #{tpu_custom_call.1} parent=1 // pred_fallthru
      _
    // Predicated region
    $region30: #{tpu_custom_call.1} parent=1 // pred_check
      _
    $region31: #{tpu_custom_call.1} parent=1 // pred_check_branch
      %57 = sbr.rel (0) target = $region33
    $region32: #{tpu_custom_call.1} parent=1 // pred_region
      %59 = vsyncadd [#allocation6], 0
      %s60 = sshll.u32 %s7, 4
      %s61 = int_to_ptr.hbm [resolvable:$true] %s60
      %s62 = sshll.u32 [#allocation7], 4
      %s63 = int_to_ptr.vmem [resolvable:$true] %s62
      %68 = dma.hbm_to_vmem [thread:$0]  %s61, 512, %s63, [#allocation6], 128, 128, 8
    $region33: #{tpu_custom_call.1} parent=1 // pred_fallthru
      _
    // Predicated region
    $region34: #{tpu_custom_call.1} parent=1 // pred_check
      _
    $region35: #{tpu_custom_call.1} parent=1 // pred_check_branch
      %70 = sbr.rel (0) target = $region37
    $region36: #{tpu_custom_call.1} parent=1 // pred_region
      _
    $region37: #{tpu_custom_call.1} parent=1 // pred_fallthru
      _
    // Predicated region
    $region38: #{tpu_custom_call.1} parent=1 // pred_check
      _
    $region39: #{tpu_custom_call.1} parent=1 // pred_check_branch
      %72 = sbr.rel (0) target = $region41
    $region40: #{tpu_custom_call.1} parent=1 // pred_region
      _
    $region41: #{tpu_custom_call.1} parent=1 // pred_fallthru
      _
    // Predicated region
    $region42: #{tpu_custom_call.1} parent=1 // pred_check
      _
    $region43: #{tpu_custom_call.1} parent=1 // pred_check_branch
      %74 = sbr.rel (0) target = $region45
    $region44: #{tpu_custom_call.1} parent=1 // pred_region
      %76 = vsyncadd [#allocation9], 0
      %s77 = sshll.u32 %s10, 4
      %s78 = int_to_ptr.hbm [resolvable:$true] %s77
      %s79 = sshll.u32 [#allocation8], 4
      %s80 = int_to_ptr.vmem [resolvable:$true] %s79
      %85 = dma.hbm_to_vmem [thread:$0]  %s78, 512, %s80, [#allocation9], 128, 128, 8
    $region45: #{tpu_custom_call.1} parent=1 // pred_fallthru
      _
    // Predicated region
    $region46: #{tpu_custom_call.1} parent=1 // pred_check
      _
    $region47: #{tpu_custom_call.1} parent=1 // pred_check_branch
      %87 = sbr.rel (0) target = $region49
    $region48: #{tpu_custom_call.1} parent=1 // pred_region
      %89 = dma.done [#allocation3], 5120
    $region49: #{tpu_custom_call.1} parent=1 // pred_fallthru
      _
    // Predicated region
    $region50: #{tpu_custom_call.1} parent=1 // pred_check
      _
    $region51: #{tpu_custom_call.1} parent=1 // pred_check_branch
      %91 = sbr.rel (0) target = $region53
    $region52: #{tpu_custom_call.1} parent=1 // pred_region
      %93 = dma.done [#allocation6], 512
    $region53: #{tpu_custom_call.1} parent=1 // pred_fallthru
      _
    // Predicated region
    $region54: #{tpu_custom_call.1} parent=1 // pred_check
      _
    $region55: #{tpu_custom_call.1} parent=1 // pred_check_branch
      %95 = sbr.rel (0) target = $region57
    $region56: #{tpu_custom_call.1} parent=1 // pred_region
      %97 = dma.done [#allocation6], 512
    $region57: #{tpu_custom_call.1} parent=1 // pred_fallthru
      _
    // Predicated region
    $region58: #{tpu_custom_call.1} parent=1 // pred_check
      _
    $region59: #{tpu_custom_call.1} parent=1 // pred_check_branch
      %99 = sbr.rel (0) target = $region61
    $region60: #{tpu_custom_call.1} parent=1 // pred_region
      %101 = dma.done [#allocation9], 512
    $region61: #{tpu_custom_call.1} parent=1 // pred_fallthru
      _
    %v102 = vld [vmem:[%s0] sm:$0xff]
    %v103 = vld [vmem:[%s0 + $0x8] sm:$0xff]
    %v104 = vld [vmem:[%s0 + $0x10] sm:$0xff]
    %v105 = vld [vmem:[%s0 + $0x18] sm:$0xff]
    %v106 = vld [vmem:[%s2] sm:$0xff]
    %v107 = vld [vmem:[%s2 + $0x8] sm:$0xff]
    %vm108 = vcmask 130048
    %v110 = vsel %vm108, %v102, 0
    %v113 = vsel %vm108, %v103, 0
    %v116 = vsel %vm108, %v104, 0
    %v119 = vsel %vm108, %v105, 0
    %121 = vmatpush.msra.mxu0 0.0
    %122 = vmatpush.msra.mxu0 0.0
    %123 = vmatpush.msra.mxu0 0.0
    %124 = vmatpush.msra.mxu0 0.0
    %125 = vmatpush.msra.mxu0 0.0
    %126 = vmatpush.msra.mxu0 0.0
    %127 = vmatpush.msra.mxu0 0.0
    %128 = vmatpush.msra.mxu0 0.0
    %129 = vmatpush.msra.mxu0 0.0
    %130 = vmatpush.msra.mxu0 0.0
    %131 = vmatpush.msra.mxu0 0.0
    %132 = vmatpush.msra.mxu0 0.0
    %133 = vmatpush.msra.mxu0 0.0
    %134 = vmatpush.msra.mxu0 0.0
    %135 = vmatpush.msra.mxu0 %v107
    %136 = vmatpush.msra.mxu0 %v106
    %137 = vmatmul.f32.gmra.mxu0 %v110
    %v138 = vpop.f32.mrf.mxu0
    %v139 = vadd.f32 0.0, %v138
    %140 = vmatmul.f32.gmra.mxu0 %v113
    %v141 = vpop.f32.mrf.mxu0
    %v142 = vadd.f32 0.0, %v141
    %143 = vmatmul.f32.gmra.mxu0 %v116
    %v144 = vpop.f32.mrf.mxu0
    %v145 = vadd.f32 0.0, %v144
    %146 = vmatmul.f32.gmra.mxu0 %v119
    %v147 = vpop.f32.mrf.mxu0
    %v148 = vadd.f32 0.0, %v147
    %149 = vdwg.mxu0
    %v150 = vmax.f32 %v139, 0.0
    %v151 = vmax.f32 %v142, 0.0
    %v152 = vmax.f32 %v145, 0.0
    %v153 = vmax.f32 %v148, 0.0
    %vm154 = vcmp.ne.f32.partialorder %v139, %v139
    %vm155 = vcmp.ne.f32.partialorder %v142, %v142
    %vm156 = vcmp.ne.f32.partialorder %v145, %v145
    %vm157 = vcmp.ne.f32.partialorder %v148, %v148
    %v158 = vadd.f32 %v139, 0.0
    %v159 = vadd.f32 %v142, 0.0
    %v160 = vadd.f32 %v145, 0.0
    %v161 = vadd.f32 %v148, 0.0
    %v162 = vand.u32 2147483647, %v139
    %v163 = vand.u32 2147483647, %v142
    %v164 = vand.u32 2147483647, %v145
    %v165 = vand.u32 2147483647, %v148
    %v166 = vsub.f32 0.0, %v162
    %v167 = vsub.f32 0.0, %v163
    %v168 = vsub.f32 0.0, %v164
    %v169 = vsub.f32 0.0, %v165
    %v170 = vmul.f32 %v166, 1.442695
    %v171 = vpow.pop %v170
    %v172 = vmul.f32 %v167, 1.442695
    %v173 = vpow.pop %v172
    %v174 = vmul.f32 %v168, 1.442695
    %v175 = vpow.pop %v174
    %v176 = vmul.f32 %v169, 1.442695
    %v177 = vpow.pop %v176
    %v178 = vadd.f32 %v171, 1.0
    %v179 = vlog2.pop %v178
    %v180 = vmul.f32 %v179, 0.6931472
    %v181 = vmul.f32 -0.5, %v171
    %v182 = vadd.f32 %v181, 1.0
    %v183 = vmul.f32 %v182, %v171
    %v184 = vand.u32 2147483647, %v171
    %vm185 = vcmp.lt.f32.partialorder %v184, 0.0004427343
    %v186 = vsel %vm185, %v183, %v180
    %v187 = vadd.f32 %v173, 1.0
    %v188 = vlog2.pop %v187
    %v189 = vmul.f32 %v188, 0.6931472
    %v190 = vmul.f32 -0.5, %v173
    %v191 = vadd.f32 %v190, 1.0
    %v192 = vmul.f32 %v191, %v173
    %v193 = vand.u32 2147483647, %v173
    %vm194 = vcmp.lt.f32.partialorder %v193, 0.0004427343
    %v195 = vsel %vm194, %v192, %v189
    %v196 = vadd.f32 %v175, 1.0
    %v197 = vlog2.pop %v196
    %v198 = vmul.f32 %v197, 0.6931472
    %v199 = vmul.f32 -0.5, %v175
    %v200 = vadd.f32 %v199, 1.0
    %v201 = vmul.f32 %v200, %v175
    %v202 = vand.u32 2147483647, %v175
    %vm203 = vcmp.lt.f32.partialorder %v202, 0.0004427343
    %v204 = vsel %vm203, %v201, %v198
    %v205 = vadd.f32 %v177, 1.0
    %v206 = vlog2.pop %v205
    %v207 = vmul.f32 %v206, 0.6931472
    %v208 = vmul.f32 -0.5, %v177
    %v209 = vadd.f32 %v208, 1.0
    %v210 = vmul.f32 %v209, %v177
    %v211 = vand.u32 2147483647, %v177
    %vm212 = vcmp.lt.f32.partialorder %v211, 0.0004427343
    %v213 = vsel %vm212, %v210, %v207
    %v214 = vadd.f32 %v150, %v186
    %v215 = vadd.f32 %v151, %v195
    %v216 = vadd.f32 %v152, %v204
    %v217 = vadd.f32 %v153, %v213
    %v218 = vsel %vm154, %v158, %v214
    %v219 = vsel %vm155, %v159, %v215
    %v220 = vsel %vm156, %v160, %v216
    %v221 = vsel %vm157, %v161, %v217
    %v222 = vtanh.pop %v218
    %v223 = vtanh.pop %v219
    %v224 = vtanh.pop %v220
    %v225 = vtanh.pop %v221
    %v226 = vmul.f32 %v139, %v222
    %v227 = vmul.f32 %v142, %v223
    %v228 = vmul.f32 %v145, %v224
    %v229 = vmul.f32 %v148, %v225
    %v230 = vld [vmem:[%s3] sm:$0xff]
    %v231 = vld [vmem:[%s3 + $0x8] sm:$0xff]
    %v232 = vld [vmem:[%s3 + $0x10] sm:$0xff]
    %v233 = vld [vmem:[%s3 + $0x18] sm:$0xff]
    %vm234 = vcmask 261120
    %v236 = vsel %vm234, %v226, 0
    %v239 = vsel %vm234, %v227, 0
    %v242 = vsel %vm234, %v228, 0
    %v245 = vsel %vm234, %v229, 0
    %247 = vmatpush.msra.mxu0 0.0
    %248 = vmatpush.msra.mxu0 0.0
    %249 = vmatpush.msra.mxu0 0.0
    %250 = vmatpush.msra.mxu0 0.0
    %251 = vmatpush.msra.mxu0 0.0
    %252 = vmatpush.msra.mxu0 0.0
    %253 = vmatpush.msra.mxu0 0.0
    %254 = vmatpush.msra.mxu0 0.0
    %255 = vmatpush.msra.mxu0 0.0
    %256 = vmatpush.msra.mxu0 0.0
    %257 = vmatpush.msra.mxu0 0.0
    %258 = vmatpush.msra.mxu0 0.0
    %259 = vmatpush.msra.mxu0 %v233
    %260 = vmatpush.msra.mxu0 %v232
    %261 = vmatpush.msra.mxu0 %v231
    %262 = vmatpush.msra.mxu0 %v230
    %263 = vmatmul.f32.gmra.mxu0 %v236
    %v264 = vpop.f32.mrf.mxu0
    %v265 = vadd.f32 0.0, %v264
    %266 = vmatmul.f32.gmra.mxu0 %v239
    %v267 = vpop.f32.mrf.mxu0
    %v268 = vadd.f32 0.0, %v267
    %269 = vmatmul.f32.gmra.mxu0 %v242
    %v270 = vpop.f32.mrf.mxu0
    %v271 = vadd.f32 0.0, %v270
    %272 = vmatmul.f32.gmra.mxu0 %v245
    %v273 = vpop.f32.mrf.mxu0
    %v274 = vadd.f32 0.0, %v273
    %275 = vdwg.mxu0
    %v276 = vmax.f32 %v265, 0.0
    %v277 = vmax.f32 %v268, 0.0
    %v278 = vmax.f32 %v271, 0.0
    %v279 = vmax.f32 %v274, 0.0
    %vm280 = vcmp.ne.f32.partialorder %v265, %v265
    %vm281 = vcmp.ne.f32.partialorder %v268, %v268
    %vm282 = vcmp.ne.f32.partialorder %v271, %v271
    %vm283 = vcmp.ne.f32.partialorder %v274, %v274
    %v284 = vadd.f32 %v265, 0.0
    %v285 = vadd.f32 %v268, 0.0
    %v286 = vadd.f32 %v271, 0.0
    %v287 = vadd.f32 %v274, 0.0
    %v288 = vand.u32 2147483647, %v265
    %v289 = vand.u32 2147483647, %v268
    %v290 = vand.u32 2147483647, %v271
    %v291 = vand.u32 2147483647, %v274
    %v292 = vsub.f32 0.0, %v288
    %v293 = vsub.f32 0.0, %v289
    %v294 = vsub.f32 0.0, %v290
    %v295 = vsub.f32 0.0, %v291
    %v296 = vmul.f32 %v292, 1.442695
    %v297 = vpow.pop %v296
    %v298 = vmul.f32 %v293, 1.442695
    %v299 = vpow.pop %v298
    %v300 = vmul.f32 %v294, 1.442695
    %v301 = vpow.pop %v300
    %v302 = vmul.f32 %v295, 1.442695
    %v303 = vpow.pop %v302
    %v304 = vadd.f32 %v297, 1.0
    %v305 = vlog2.pop %v304
    %v306 = vmul.f32 %v305, 0.6931472
    %v307 = vmul.f32 -0.5, %v297
    %v308 = vadd.f32 %v307, 1.0
    %v309 = vmul.f32 %v308, %v297
    %v310 = vand.u32 2147483647, %v297
    %vm311 = vcmp.lt.f32.partialorder %v310, 0.0004427343
    %v312 = vsel %vm311, %v309, %v306
    %v313 = vadd.f32 %v299, 1.0
    %v314 = vlog2.pop %v313
    %v315 = vmul.f32 %v314, 0.6931472
    %v316 = vmul.f32 -0.5, %v299
    %v317 = vadd.f32 %v316, 1.0
    %v318 = vmul.f32 %v317, %v299
    %v319 = vand.u32 2147483647, %v299
    %vm320 = vcmp.lt.f32.partialorder %v319, 0.0004427343
    %v321 = vsel %vm320, %v318, %v315
    %v322 = vadd.f32 %v301, 1.0
    %v323 = vlog2.pop %v322
    %v324 = vmul.f32 %v323, 0.6931472
    %v325 = vmul.f32 -0.5, %v301
    %v326 = vadd.f32 %v325, 1.0
    %v327 = vmul.f32 %v326, %v301
    %v328 = vand.u32 2147483647, %v301
    %vm329 = vcmp.lt.f32.partialorder %v328, 0.0004427343
    %v330 = vsel %vm329, %v327, %v324
    %v331 = vadd.f32 %v303, 1.0
    %v332 = vlog2.pop %v331
    %v333 = vmul.f32 %v332, 0.6931472
    %v334 = vmul.f32 -0.5, %v303
    %v335 = vadd.f32 %v334, 1.0
    %v336 = vmul.f32 %v335, %v303
    %v337 = vand.u32 2147483647, %v303
    %vm338 = vcmp.lt.f32.partialorder %v337, 0.0004427343
    %v339 = vsel %vm338, %v336, %v333
    %v340 = vadd.f32 %v276, %v312
    %v341 = vadd.f32 %v277, %v321
    %v342 = vadd.f32 %v278, %v330
    %v343 = vadd.f32 %v279, %v339
    %v344 = vsel %vm280, %v284, %v340
    %v345 = vsel %vm281, %v285, %v341
    %v346 = vsel %vm282, %v286, %v342
    %v347 = vsel %vm283, %v287, %v343
    %v348 = vtanh.pop %v344
    %v349 = vtanh.pop %v345
    %v350 = vtanh.pop %v346
    %v351 = vtanh.pop %v347
    %v352 = vmul.f32 %v265, %v348
    %v353 = vmul.f32 %v268, %v349
    %v354 = vmul.f32 %v271, %v350
    %v355 = vmul.f32 %v274, %v351
    %v356 = vlaneseq
    %v357 = vshrl.u32 %v356, 7
    %v358 = vadd.s32 %v357, 8
    %v359 = vadd.s32 %v357, 16
    %v360 = vadd.s32 %v357, 24
    %vm361 = vcmp.ge.s32.totalorder %v357, 16
    %vm362 = vcmp.ge.s32.totalorder %v358, 16
    %vm363 = vcmp.ge.s32.totalorder %v359, 16
    %vm364 = vcmp.ge.s32.totalorder %v360, 16
    %v365 = vsel %vm361, 16, 0
    %v366 = vsel %vm362, 16, 0
    %v367 = vsel %vm363, 16, 0
    %v368 = vsel %vm364, 16, 0
    %v369 = vsub.s32 %v357, %v365
    %v370 = vsub.s32 %v358, %v366
    %v371 = vsub.s32 %v359, %v367
    %v372 = vsub.s32 %v360, %v368
    %v373 = vadd.s32 %v369, 4294967294
    %v374 = vadd.s32 %v370, 4294967294
    %v375 = vadd.s32 %v371, 4294967294
    %v376 = vadd.s32 %v372, 4294967294
    %vm377 = vcmp.ge.s32.totalorder %v373, 0
    %vm378 = vcmp.ge.s32.totalorder %v374, 0
    %vm379 = vcmp.ge.s32.totalorder %v375, 0
    %vm380 = vcmp.ge.s32.totalorder %v376, 0
    %vm381 = vcmp.lt.s32.totalorder %v373, 16
    %vm382 = vcmp.lt.s32.totalorder %v374, 16
    %vm383 = vcmp.lt.s32.totalorder %v375, 16
    %vm384 = vcmp.lt.s32.totalorder %v376, 16
    %vm385 = vmand %vm377, %vm381
    %vm386 = vmand %vm378, %vm382
    %vm387 = vmand %vm379, %vm383
    %vm388 = vmand %vm380, %vm384
    %v389 = vadd.s32 %v369, 4294967295
    %v390 = vadd.s32 %v370, 4294967295
    %v391 = vadd.s32 %v371, 4294967295
    %v392 = vadd.s32 %v372, 4294967295
    %vm393 = vcmp.ge.s32.totalorder %v389, 0
    %vm394 = vcmp.ge.s32.totalorder %v390, 0
    %vm395 = vcmp.ge.s32.totalorder %v391, 0
    %vm396 = vcmp.ge.s32.totalorder %v392, 0
    %vm397 = vcmp.lt.s32.totalorder %v389, 16
    %vm398 = vcmp.lt.s32.totalorder %v390, 16
    %vm399 = vcmp.lt.s32.totalorder %v391, 16
    %vm400 = vcmp.lt.s32.totalorder %v392, 16
    %vm401 = vmand %vm393, %vm397
    %vm402 = vmand %vm394, %vm398
    %vm403 = vmand %vm395, %vm399
    %vm404 = vmand %vm396, %vm400
    %v405 = vadd.s32 %v369, 1
    %v406 = vadd.s32 %v370, 1
    %v407 = vadd.s32 %v371, 1
    %v408 = vadd.s32 %v372, 1
    %vm409 = vcmp.ge.s32.totalorder %v405, 0
    %vm410 = vcmp.ge.s32.totalorder %v406, 0
    %vm411 = vcmp.ge.s32.totalorder %v407, 0
    %vm412 = vcmp.ge.s32.totalorder %v408, 0
    %vm413 = vcmp.lt.s32.totalorder %v405, 16
    %vm414 = vcmp.lt.s32.totalorder %v406, 16
    %vm415 = vcmp.lt.s32.totalorder %v407, 16
    %vm416 = vcmp.lt.s32.totalorder %v408, 16
    %vm417 = vmand %vm409, %vm413
    %vm418 = vmand %vm410, %vm414
    %vm419 = vmand %vm411, %vm415
    %vm420 = vmand %vm412, %vm416
    %v421 = vadd.s32 %v369, 2
    %v422 = vadd.s32 %v370, 2
    %v423 = vadd.s32 %v371, 2
    %v424 = vadd.s32 %v372, 2
    %vm425 = vcmp.ge.s32.totalorder %v421, 0
    %vm426 = vcmp.ge.s32.totalorder %v422, 0
    %vm427 = vcmp.ge.s32.totalorder %v423, 0
    %vm428 = vcmp.ge.s32.totalorder %v424, 0
    %vm429 = vcmp.lt.s32.totalorder %v421, 16
    %vm430 = vcmp.lt.s32.totalorder %v422, 16
    %vm431 = vcmp.lt.s32.totalorder %v423, 16
    %vm432 = vcmp.lt.s32.totalorder %v424, 16
    %vm433 = vmand %vm425, %vm429
    %vm434 = vmand %vm426, %vm430
    %vm435 = vmand %vm427, %vm431
    %vm436 = vmand %vm428, %vm432
    %s437 = scalar_lea.vmem [#allocation2], 64
    %v438 = vld [vmem:[%s437] sm:$0xff]
    %v439 = vld [vmem:[%s437 + $0x8] sm:$0xff]
    %v440 = vld [vmem:[%s437 + $0x10] sm:$0xff]
    %v441 = vld [vmem:[%s437 + $0x18] sm:$0xff]
    %v442 = vrot.slane %v352, 6
    %v443 = vrot.slane %v353, 6
    %v444 = vrot.slane %v354, 6
    %v445 = vrot.slane %v355, 6
    %vm446 = vcmp.lt.s32.totalorder %v357, 2
    %v447 = vsel %vm446, %v444, %v445
    %v448 = vsel %vm446, %v443, %v444
    %v449 = vsel %vm446, %v442, %v443
    %v450 = vsel %vm446, %v445, %v442
    %v451 = vsel %vm385, 1, 0
    %v452 = vsel %vm386, 1, 0
    %v453 = vsel %vm387, 1, 0
    %v454 = vsel %vm388, 1, 0
    %vm455 = vcmp.eq.s32.totalorder %v451, 1
    %vm456 = vcmp.eq.s32.totalorder %v452, 1
    %vm457 = vcmp.eq.s32.totalorder %v453, 1
    %vm458 = vcmp.eq.s32.totalorder %v454, 1
    %v459 = vsel %vm455, %v450, 0.0
    %v460 = vsel %vm456, %v449, 0.0
    %v461 = vsel %vm457, %v448, 0.0
    %v462 = vsel %vm458, %v447, 0.0
    %v463 = vld [vmem:[#allocation2] sm:$0xff]
    %v464 = vld [vmem:[#allocation2 + $0x8] sm:$0xff]
    %v465 = vld [vmem:[#allocation2 + $0x10] sm:$0xff]
    %v466 = vld [vmem:[#allocation2 + $0x18] sm:$0xff]
    %v468 = vsel %vm234, %v459, 0
    %v471 = vsel %vm234, %v460, 0
    %v474 = vsel %vm234, %v461, 0
    %v477 = vsel %vm234, %v462, 0
    %479 = vmatpush.msra.mxu0 0.0
    %480 = vmatpush.msra.mxu0 0.0
    %481 = vmatpush.msra.mxu0 0.0
    %482 = vmatpush.msra.mxu0 0.0
    %483 = vmatpush.msra.mxu0 0.0
    %484 = vmatpush.msra.mxu0 0.0
    %485 = vmatpush.msra.mxu0 0.0
    %486 = vmatpush.msra.mxu0 0.0
    %487 = vmatpush.msra.mxu0 0.0
    %488 = vmatpush.msra.mxu0 0.0
    %489 = vmatpush.msra.mxu0 0.0
    %490 = vmatpush.msra.mxu0 0.0
    %491 = vmatpush.msra.mxu0 %v466
    %492 = vmatpush.msra.mxu0 %v465
    %493 = vmatpush.msra.mxu0 %v464
    %494 = vmatpush.msra.mxu0 %v463
    %495 = vmatmul.f32.gmra.mxu0 %v468
    %v496 = vpop.f32.mrf.mxu0
    %v497 = vadd.f32 0.0, %v496
    %498 = vmatmul.f32.gmra.mxu0 %v471
    %v499 = vpop.f32.mrf.mxu0
    %v500 = vadd.f32 0.0, %v499
    %501 = vmatmul.f32.gmra.mxu0 %v474
    %v502 = vpop.f32.mrf.mxu0
    %v503 = vadd.f32 0.0, %v502
    %504 = vmatmul.f32.gmra.mxu0 %v477
    %v505 = vpop.f32.mrf.mxu0
    %v506 = vadd.f32 0.0, %v505
    %507 = vdwg.mxu0
    %v509 = vsel %vm234, %v352, 0
    %v512 = vsel %vm234, %v353, 0
    %v515 = vsel %vm234, %v354, 0
    %v518 = vsel %vm234, %v355, 0
    %520 = vmatpush.msra.mxu0 0.0
    %521 = vmatpush.msra.mxu0 0.0
    %522 = vmatpush.msra.mxu0 0.0
    %523 = vmatpush.msra.mxu0 0.0
    %524 = vmatpush.msra.mxu0 0.0
    %525 = vmatpush.msra.mxu0 0.0
    %526 = vmatpush.msra.mxu0 0.0
    %527 = vmatpush.msra.mxu0 0.0
    %528 = vmatpush.msra.mxu0 0.0
    %529 = vmatpush.msra.mxu0 0.0
    %530 = vmatpush.msra.mxu0 0.0
    %531 = vmatpush.msra.mxu0 0.0
    %532 = vmatpush.msra.mxu0 %v441
    %533 = vmatpush.msra.mxu0 %v440
    %534 = vmatpush.msra.mxu0 %v439
    %535 = vmatpush.msra.mxu0 %v438
    %536 = vmatmul.f32.gmra.mxu0 %v509
    %v537 = vpop.f32.mrf.mxu0
    %v538 = vadd.f32 %v497, %v537
    %539 = vmatmul.f32.gmra.mxu0 %v512
    %v540 = vpop.f32.mrf.mxu0
    %v541 = vadd.f32 %v500, %v540
    %542 = vmatmul.f32.gmra.mxu0 %v515
    %v543 = vpop.f32.mrf.mxu0
    %v544 = vadd.f32 %v503, %v543
    %545 = vmatmul.f32.gmra.mxu0 %v518
    %v546 = vpop.f32.mrf.mxu0
    %v547 = vadd.f32 %v506, %v546
    %548 = vdwg.mxu0
    %v549 = vrot.slane %v352, 7
    %v550 = vrot.slane %v353, 7
    %v551 = vrot.slane %v354, 7
    %v552 = vrot.slane %v355, 7
    %vm553 = vcmp.lt.s32.totalorder %v357, 1
    %v554 = vsel %vm553, %v551, %v552
    %v555 = vsel %vm553, %v550, %v551
    %v556 = vsel %vm553, %v549, %v550
    %v557 = vsel %vm553, %v552, %v549
    %v558 = vsel %vm401, 1, 0
    %v559 = vsel %vm402, 1, 0
    %v560 = vsel %vm403, 1, 0
    %v561 = vsel %vm404, 1, 0
    %vm562 = vcmp.eq.s32.totalorder %v558, 1
    %vm563 = vcmp.eq.s32.totalorder %v559, 1
    %vm564 = vcmp.eq.s32.totalorder %v560, 1
    %vm565 = vcmp.eq.s32.totalorder %v561, 1
    %v566 = vsel %vm562, %v557, 0.0
    %v567 = vsel %vm563, %v556, 0.0
    %v568 = vsel %vm564, %v555, 0.0
    %v569 = vsel %vm565, %v554, 0.0
    %s570 = scalar_lea.vmem [#allocation2], 32
    %v571 = vld [vmem:[%s570] sm:$0xff]
    %v572 = vld [vmem:[%s570 + $0x8] sm:$0xff]
    %v573 = vld [vmem:[%s570 + $0x10] sm:$0xff]
    %v574 = vld [vmem:[%s570 + $0x18] sm:$0xff]
    %v576 = vsel %vm234, %v566, 0
    %v579 = vsel %vm234, %v567, 0
    %v582 = vsel %vm234, %v568, 0
    %v585 = vsel %vm234, %v569, 0
    %587 = vmatpush.msra.mxu0 0.0
    %588 = vmatpush.msra.mxu0 0.0
    %589 = vmatpush.msra.mxu0 0.0
    %590 = vmatpush.msra.mxu0 0.0
    %591 = vmatpush.msra.mxu0 0.0
    %592 = vmatpush.msra.mxu0 0.0
    %593 = vmatpush.msra.mxu0 0.0
    %594 = vmatpush.msra.mxu0 0.0
    %595 = vmatpush.msra.mxu0 0.0
    %596 = vmatpush.msra.mxu0 0.0
    %597 = vmatpush.msra.mxu0 0.0
    %598 = vmatpush.msra.mxu0 0.0
    %599 = vmatpush.msra.mxu0 %v574
    %600 = vmatpush.msra.mxu0 %v573
    %601 = vmatpush.msra.mxu0 %v572
    %602 = vmatpush.msra.mxu0 %v571
    %603 = vmatmul.f32.gmra.mxu0 %v576
    %v604 = vpop.f32.mrf.mxu0
    %v605 = vadd.f32 0.0, %v604
    %606 = vmatmul.f32.gmra.mxu0 %v579
    %v607 = vpop.f32.mrf.mxu0
    %v608 = vadd.f32 0.0, %v607
    %609 = vmatmul.f32.gmra.mxu0 %v582
    %v610 = vpop.f32.mrf.mxu0
    %v611 = vadd.f32 0.0, %v610
    %612 = vmatmul.f32.gmra.mxu0 %v585
    %v613 = vpop.f32.mrf.mxu0
    %v614 = vadd.f32 0.0, %v613
    %615 = vdwg.mxu0
    %v616 = vadd.f32 %v538, %v605
    %v617 = vadd.f32 %v541, %v608
    %v618 = vadd.f32 %v544, %v611
    %v619 = vadd.f32 %v547, %v614
    %v620 = vrot.slane %v352, 1
    %v621 = vrot.slane %v353, 1
    %v622 = vrot.slane %v354, 1
    %v623 = vrot.slane %v355, 1
    %vm624 = vcmp.lt.s32.totalorder %v357, 7
    %v625 = vsel %vm624, %v622, %v623
    %v626 = vsel %vm624, %v621, %v622
    %v627 = vsel %vm624, %v620, %v621
    %v628 = vsel %vm624, %v623, %v620
    %v629 = vsel %vm417, 1, 0
    %v630 = vsel %vm418, 1, 0
    %v631 = vsel %vm419, 1, 0
    %v632 = vsel %vm420, 1, 0
    %vm633 = vcmp.eq.s32.totalorder %v629, 1
    %vm634 = vcmp.eq.s32.totalorder %v630, 1
    %vm635 = vcmp.eq.s32.totalorder %v631, 1
    %vm636 = vcmp.eq.s32.totalorder %v632, 1
    %v637 = vsel %vm633, %v627, 0.0
    %v638 = vsel %vm634, %v626, 0.0
    %v639 = vsel %vm635, %v625, 0.0
    %v640 = vsel %vm636, %v628, 0.0
    %s641 = scalar_lea.vmem [#allocation2], 96
    %v642 = vld [vmem:[%s641] sm:$0xff]
    %v643 = vld [vmem:[%s641 + $0x8] sm:$0xff]
    %v644 = vld [vmem:[%s641 + $0x10] sm:$0xff]
    %v645 = vld [vmem:[%s641 + $0x18] sm:$0xff]
    %v647 = vsel %vm234, %v637, 0
    %v650 = vsel %vm234, %v638, 0
    %v653 = vsel %vm234, %v639, 0
    %v656 = vsel %vm234, %v640, 0
    %658 = vmatpush.msra.mxu0 0.0
    %659 = vmatpush.msra.mxu0 0.0
    %660 = vmatpush.msra.mxu0 0.0
    %661 = vmatpush.msra.mxu0 0.0
    %662 = vmatpush.msra.mxu0 0.0
    %663 = vmatpush.msra.mxu0 0.0
    %664 = vmatpush.msra.mxu0 0.0
    %665 = vmatpush.msra.mxu0 0.0
    %666 = vmatpush.msra.mxu0 0.0
    %667 = vmatpush.msra.mxu0 0.0
    %668 = vmatpush.msra.mxu0 0.0
    %669 = vmatpush.msra.mxu0 0.0
    %670 = vmatpush.msra.mxu0 %v645
    %671 = vmatpush.msra.mxu0 %v644
    %672 = vmatpush.msra.mxu0 %v643
    %673 = vmatpush.msra.mxu0 %v642
    %674 = vmatmul.f32.gmra.mxu0 %v647
    %v675 = vpop.f32.mrf.mxu0
    %v676 = vadd.f32 0.0, %v675
    %677 = vmatmul.f32.gmra.mxu0 %v650
    %v678 = vpop.f32.mrf.mxu0
    %v679 = vadd.f32 0.0, %v678
    %680 = vmatmul.f32.gmra.mxu0 %v653
    %v681 = vpop.f32.mrf.mxu0
    %v682 = vadd.f32 0.0, %v681
    %683 = vmatmul.f32.gmra.mxu0 %v656
    %v684 = vpop.f32.mrf.mxu0
    %v685 = vadd.f32 0.0, %v684
    %686 = vdwg.mxu0
    %v687 = vadd.f32 %v616, %v676
    %v688 = vadd.f32 %v617, %v679
    %v689 = vadd.f32 %v618, %v682
    %v690 = vadd.f32 %v619, %v685
    %v691 = vrot.slane %v352, 2
    %v692 = vrot.slane %v353, 2
    %v693 = vrot.slane %v354, 2
    %v694 = vrot.slane %v355, 2
    %vm695 = vcmp.lt.s32.totalorder %v357, 6
    %v696 = vsel %vm695, %v693, %v694
    %v697 = vsel %vm695, %v692, %v693
    %v698 = vsel %vm695, %v691, %v692
    %v699 = vsel %vm695, %v694, %v691
    %v700 = vsel %vm433, 1, 0
    %v701 = vsel %vm434, 1, 0
    %v702 = vsel %vm435, 1, 0
    %v703 = vsel %vm436, 1, 0
    %vm704 = vcmp.eq.s32.totalorder %v700, 1
    %vm705 = vcmp.eq.s32.totalorder %v701, 1
    %vm706 = vcmp.eq.s32.totalorder %v702, 1
    %vm707 = vcmp.eq.s32.totalorder %v703, 1
    %v708 = vsel %vm704, %v698, 0.0
    %v709 = vsel %vm705, %v697, 0.0
    %v710 = vsel %vm706, %v696, 0.0
    %v711 = vsel %vm707, %v699, 0.0
    %s712 = scalar_lea.vmem [#allocation2], 128
    %v713 = vld [vmem:[%s712] sm:$0xff]
    %v714 = vld [vmem:[%s712 + $0x8] sm:$0xff]
    %v715 = vld [vmem:[%s712 + $0x10] sm:$0xff]
    %v716 = vld [vmem:[%s712 + $0x18] sm:$0xff]
    %v718 = vsel %vm234, %v708, 0
    %v721 = vsel %vm234, %v709, 0
    %v724 = vsel %vm234, %v710, 0
    %v727 = vsel %vm234, %v711, 0
    %729 = vmatpush.msra.mxu0 0.0
    %730 = vmatpush.msra.mxu0 0.0
    %731 = vmatpush.msra.mxu0 0.0
    %732 = vmatpush.msra.mxu0 0.0
    %733 = vmatpush.msra.mxu0 0.0
    %734 = vmatpush.msra.mxu0 0.0
    %735 = vmatpush.msra.mxu0 0.0
    %736 = vmatpush.msra.mxu0 0.0
    %737 = vmatpush.msra.mxu0 0.0
    %738 = vmatpush.msra.mxu0 0.0
    %739 = vmatpush.msra.mxu0 0.0
    %740 = vmatpush.msra.mxu0 0.0
    %741 = vmatpush.msra.mxu0 %v716
    %742 = vmatpush.msra.mxu0 %v715
    %743 = vmatpush.msra.mxu0 %v714
    %744 = vmatpush.msra.mxu0 %v713
    %745 = vmatmul.f32.gmra.mxu0 %v718
    %v746 = vpop.f32.mrf.mxu0
    %v747 = vadd.f32 0.0, %v746
    %748 = vmatmul.f32.gmra.mxu0 %v721
    %v749 = vpop.f32.mrf.mxu0
    %v750 = vadd.f32 0.0, %v749
    %751 = vmatmul.f32.gmra.mxu0 %v724
    %v752 = vpop.f32.mrf.mxu0
    %v753 = vadd.f32 0.0, %v752
    %754 = vmatmul.f32.gmra.mxu0 %v727
    %v755 = vpop.f32.mrf.mxu0
    %v756 = vadd.f32 0.0, %v755
    %757 = vdwg.mxu0
    %v758 = vadd.f32 %v687, %v747
    %v759 = vadd.f32 %v688, %v750
    %v760 = vadd.f32 %v689, %v753
    %v761 = vadd.f32 %v690, %v756
    %v762 = vld [vmem:[%s5] sm:$0x1]
    %v764 = vperm.slane %v762, 0
    %v766 = vadd.f32 %v758, %v764
    %v767 = vadd.f32 %v759, %v764
    %v768 = vadd.f32 %v760, %v764
    %v769 = vadd.f32 %v761, %v764
    %v770 = vmax.f32 %v766, 0.0
    %v771 = vmax.f32 %v767, 0.0
    %v772 = vmax.f32 %v768, 0.0
    %v773 = vmax.f32 %v769, 0.0
    %vm774 = vcmp.ne.f32.partialorder %v766, %v766
    %vm775 = vcmp.ne.f32.partialorder %v767, %v767
    %vm776 = vcmp.ne.f32.partialorder %v768, %v768
    %vm777 = vcmp.ne.f32.partialorder %v769, %v769
    %v778 = vadd.f32 %v766, 0.0
    %v779 = vadd.f32 %v767, 0.0
    %v780 = vadd.f32 %v768, 0.0
    %v781 = vadd.f32 %v769, 0.0
    %v782 = vand.u32 2147483647, %v766
    %v783 = vand.u32 2147483647, %v767
    %v784 = vand.u32 2147483647, %v768
    %v785 = vand.u32 2147483647, %v769
    %v786 = vsub.f32 0.0, %v782
    %v787 = vsub.f32 0.0, %v783
    %v788 = vsub.f32 0.0, %v784
    %v789 = vsub.f32 0.0, %v785
    %v790 = vmul.f32 %v786, 1.442695
    %v791 = vpow.pop %v790
    %v792 = vmul.f32 %v787, 1.442695
    %v793 = vpow.pop %v792
    %v794 = vmul.f32 %v788, 1.442695
    %v795 = vpow.pop %v794
    %v796 = vmul.f32 %v789, 1.442695
    %v797 = vpow.pop %v796
    %v798 = vadd.f32 %v791, 1.0
    %v799 = vlog2.pop %v798
    %v800 = vmul.f32 %v799, 0.6931472
    %v801 = vmul.f32 -0.5, %v791
    %v802 = vadd.f32 %v801, 1.0
    %v803 = vmul.f32 %v802, %v791
    %v804 = vand.u32 2147483647, %v791
    %vm805 = vcmp.lt.f32.partialorder %v804, 0.0004427343
    %v806 = vsel %vm805, %v803, %v800
    %v807 = vadd.f32 %v793, 1.0
    %v808 = vlog2.pop %v807
    %v809 = vmul.f32 %v808, 0.6931472
    %v810 = vmul.f32 -0.5, %v793
    %v811 = vadd.f32 %v810, 1.0
    %v812 = vmul.f32 %v811, %v793
    %v813 = vand.u32 2147483647, %v793
    %vm814 = vcmp.lt.f32.partialorder %v813, 0.0004427343
    %v815 = vsel %vm814, %v812, %v809
    %v816 = vadd.f32 %v795, 1.0
    %v817 = vlog2.pop %v816
    %v818 = vmul.f32 %v817, 0.6931472
    %v819 = vmul.f32 -0.5, %v795
    %v820 = vadd.f32 %v819, 1.0
    %v821 = vmul.f32 %v820, %v795
    %v822 = vand.u32 2147483647, %v795
    %vm823 = vcmp.lt.f32.partialorder %v822, 0.0004427343
    %v824 = vsel %vm823, %v821, %v818
    %v825 = vadd.f32 %v797, 1.0
    %v826 = vlog2.pop %v825
    %v827 = vmul.f32 %v826, 0.6931472
    %v828 = vmul.f32 -0.5, %v797
    %v829 = vadd.f32 %v828, 1.0
    %v830 = vmul.f32 %v829, %v797
    %v831 = vand.u32 2147483647, %v797
    %vm832 = vcmp.lt.f32.partialorder %v831, 0.0004427343
    %v833 = vsel %vm832, %v830, %v827
    %v834 = vadd.f32 %v770, %v806
    %v835 = vadd.f32 %v771, %v815
    %v836 = vadd.f32 %v772, %v824
    %v837 = vadd.f32 %v773, %v833
    %v838 = vsel %vm774, %v778, %v834
    %v839 = vsel %vm775, %v779, %v835
    %v840 = vsel %vm776, %v780, %v836
    %v841 = vsel %vm777, %v781, %v837
    %v842 = vtanh.pop %v838
    %v843 = vtanh.pop %v839
    %v844 = vtanh.pop %v840
    %v845 = vtanh.pop %v841
    %v846 = vmul.f32 %v766, %v842
    %v847 = vmul.f32 %v767, %v843
    %v848 = vmul.f32 %v768, %v844
    %v849 = vmul.f32 %v769, %v845
    %v850 = vxor.u32 %v846, 2147483648
    %v851 = vxor.u32 %v847, 2147483648
    %v852 = vxor.u32 %v848, 2147483648
    %v853 = vxor.u32 %v849, 2147483648
    %v854 = vmul.f32 %v850, 1.442695
    %v855 = vpow.pop %v854
    %v856 = vmul.f32 %v851, 1.442695
    %v857 = vpow.pop %v856
    %v858 = vmul.f32 %v852, 1.442695
    %v859 = vpow.pop %v858
    %v860 = vmul.f32 %v853, 1.442695
    %v861 = vpow.pop %v860
    %v862 = vadd.f32 %v855, 1.0
    %v863 = vadd.f32 %v857, 1.0
    %v864 = vadd.f32 %v859, 1.0
    %v865 = vadd.f32 %v861, 1.0
    %v866 = vrcp.pop %v862
    %v867 = vmul.f32 %v862, %v866
    %v868 = vsub.f32 1.0, %v867
    %v869 = vmul.f32 %v866, %v868
    %v870 = vadd.f32 %v866, %v869
    %vm871 = vweird.f32 %v862
    %vm872 = vweird.f32 %v866
    %vm873 = vmor %vm871, %vm872
    %v874 = vsel %vm873, %v866, %v870
    %v875 = vand.u32 2147483647, %v862
    %vm876 = vcmp.eq.f32.partialorder %v875, 8.507059e+37
    %v877 = vand.u32 %v862, 2147483648
    %v878 = vor.u32 1.1754944e-38, %v877
    %v879 = vsel %vm876, %v878, %v874
    %v880 = vmul.f32 1.0, %v879
    %v881 = vrcp.pop %v863
    %v882 = vmul.f32 %v863, %v881
    %v883 = vsub.f32 1.0, %v882
    %v884 = vmul.f32 %v881, %v883
    %v885 = vadd.f32 %v881, %v884
    %vm886 = vweird.f32 %v863
    %vm887 = vweird.f32 %v881
    %vm888 = vmor %vm886, %vm887
    %v889 = vsel %vm888, %v881, %v885
    %v890 = vand.u32 2147483647, %v863
    %vm891 = vcmp.eq.f32.partialorder %v890, 8.507059e+37
    %v892 = vand.u32 %v863, 2147483648
    %v893 = vor.u32 1.1754944e-38, %v892
    %v894 = vsel %vm891, %v893, %v889
    %v895 = vmul.f32 1.0, %v894
    %v896 = vrcp.pop %v864
    %v897 = vmul.f32 %v864, %v896
    %v898 = vsub.f32 1.0, %v897
    %v899 = vmul.f32 %v896, %v898
    %v900 = vadd.f32 %v896, %v899
    %vm901 = vweird.f32 %v864
    %vm902 = vweird.f32 %v896
    %vm903 = vmor %vm901, %vm902
    %v904 = vsel %vm903, %v896, %v900
    %v905 = vand.u32 2147483647, %v864
    %vm906 = vcmp.eq.f32.partialorder %v905, 8.507059e+37
    %v907 = vand.u32 %v864, 2147483648
    %v908 = vor.u32 1.1754944e-38, %v907
    %v909 = vsel %vm906, %v908, %v904
    %v910 = vmul.f32 1.0, %v909
    %v911 = vrcp.pop %v865
    %v912 = vmul.f32 %v865, %v911
    %v913 = vsub.f32 1.0, %v912
    %v914 = vmul.f32 %v911, %v913
    %v915 = vadd.f32 %v911, %v914
    %vm916 = vweird.f32 %v865
    %vm917 = vweird.f32 %v911
    %vm918 = vmor %vm916, %vm917
    %v919 = vsel %vm918, %v911, %v915
    %v920 = vand.u32 2147483647, %v865
    %vm921 = vcmp.eq.f32.partialorder %v920, 8.507059e+37
    %v922 = vand.u32 %v865, 2147483648
    %v923 = vor.u32 1.1754944e-38, %v922
    %v924 = vsel %vm921, %v923, %v919
    %v925 = vmul.f32 1.0, %v924
    %930 = vrot.lane.b32.xlu0 %v880, 96
    %v931 = vpop.permute.xlu0 %930
    %932 = vrot.lane.b32.xlu0 %v895, 96
    %v933 = vpop.permute.xlu0 %932
    %934 = vrot.lane.b32.xlu0 %v910, 96
    %v935 = vpop.permute.xlu0 %934
    %936 = vrot.lane.b32.xlu0 %v925, 96
    %v937 = vpop.permute.xlu0 %936
    %v942 = vmul.f32 %v846, %v931
    %v943 = vmul.f32 %v847, %v933
    %v944 = vmul.f32 %v848, %v935
    %v945 = vmul.f32 %v849, %v937
    %v946 = vadd.f32 %v352, %v942
    %v947 = vadd.f32 %v353, %v943
    %v948 = vadd.f32 %v354, %v944
    %v949 = vadd.f32 %v355, %v945
    %s950 = scalar_lea.vmem [#allocation2], 224
    %v951 = vld [vmem:[%s950] sm:$0xff]
    %v952 = vld [vmem:[%s950 + $0x8] sm:$0xff]
    %v953 = vld [vmem:[%s950 + $0x10] sm:$0xff]
    %v954 = vld [vmem:[%s950 + $0x18] sm:$0xff]
    %v955 = vrot.slane %v946, 6
    %v956 = vrot.slane %v947, 6
    %v957 = vrot.slane %v948, 6
    %v958 = vrot.slane %v949, 6
    %v959 = vsel %vm446, %v957, %v958
    %v960 = vsel %vm446, %v956, %v957
    %v961 = vsel %vm446, %v955, %v956
    %v962 = vsel %vm446, %v958, %v955
    %v963 = vsel %vm455, %v962, 0.0
    %v964 = vsel %vm456, %v961, 0.0
    %v965 = vsel %vm457, %v960, 0.0
    %v966 = vsel %vm458, %v959, 0.0
    %s967 = scalar_lea.vmem [#allocation2], 160
    %v968 = vld [vmem:[%s967] sm:$0xff]
    %v969 = vld [vmem:[%s967 + $0x8] sm:$0xff]
    %v970 = vld [vmem:[%s967 + $0x10] sm:$0xff]
    %v971 = vld [vmem:[%s967 + $0x18] sm:$0xff]
    %v973 = vsel %vm234, %v963, 0
    %v976 = vsel %vm234, %v964, 0
    %v979 = vsel %vm234, %v965, 0
    %v982 = vsel %vm234, %v966, 0
    %984 = vmatpush.msra.mxu0 0.0
    %985 = vmatpush.msra.mxu0 0.0
    %986 = vmatpush.msra.mxu0 0.0
    %987 = vmatpush.msra.mxu0 0.0
    %988 = vmatpush.msra.mxu0 0.0
    %989 = vmatpush.msra.mxu0 0.0
    %990 = vmatpush.msra.mxu0 0.0
    %991 = vmatpush.msra.mxu0 0.0
    %992 = vmatpush.msra.mxu0 0.0
    %993 = vmatpush.msra.mxu0 0.0
    %994 = vmatpush.msra.mxu0 0.0
    %995 = vmatpush.msra.mxu0 0.0
    %996 = vmatpush.msra.mxu0 %v971
    %997 = vmatpush.msra.mxu0 %v970
    %998 = vmatpush.msra.mxu0 %v969
    %999 = vmatpush.msra.mxu0 %v968
    %1000 = vmatmul.f32.gmra.mxu0 %v973
    %v1001 = vpop.f32.mrf.mxu0
    %v1002 = vadd.f32 0.0, %v1001
    %1003 = vmatmul.f32.gmra.mxu0 %v976
    %v1004 = vpop.f32.mrf.mxu0
    %v1005 = vadd.f32 0.0, %v1004
    %1006 = vmatmul.f32.gmra.mxu0 %v979
    %v1007 = vpop.f32.mrf.mxu0
    %v1008 = vadd.f32 0.0, %v1007
    %1009 = vmatmul.f32.gmra.mxu0 %v982
    %v1010 = vpop.f32.mrf.mxu0
    %v1011 = vadd.f32 0.0, %v1010
    %1012 = vdwg.mxu0
    %v1014 = vsel %vm234, %v946, 0
    %v1017 = vsel %vm234, %v947, 0
    %v1020 = vsel %vm234, %v948, 0
    %v1023 = vsel %vm234, %v949, 0
    %1025 = vmatpush.msra.mxu0 0.0
    %1026 = vmatpush.msra.mxu0 0.0
    %1027 = vmatpush.msra.mxu0 0.0
    %1028 = vmatpush.msra.mxu0 0.0
    %1029 = vmatpush.msra.mxu0 0.0
    %1030 = vmatpush.msra.mxu0 0.0
    %1031 = vmatpush.msra.mxu0 0.0
    %1032 = vmatpush.msra.mxu0 0.0
    %1033 = vmatpush.msra.mxu0 0.0
    %1034 = vmatpush.msra.mxu0 0.0
    %1035 = vmatpush.msra.mxu0 0.0
    %1036 = vmatpush.msra.mxu0 0.0
    %1037 = vmatpush.msra.mxu0 %v954
    %1038 = vmatpush.msra.mxu0 %v953
    %1039 = vmatpush.msra.mxu0 %v952
    %1040 = vmatpush.msra.mxu0 %v951
    %1041 = vmatmul.f32.gmra.mxu0 %v1014
    %v1042 = vpop.f32.mrf.mxu0
    %v1043 = vadd.f32 %v1002, %v1042
    %1044 = vmatmul.f32.gmra.mxu0 %v1017
    %v1045 = vpop.f32.mrf.mxu0
    %v1046 = vadd.f32 %v1005, %v1045
    %1047 = vmatmul.f32.gmra.mxu0 %v1020
    %v1048 = vpop.f32.mrf.mxu0
    %v1049 = vadd.f32 %v1008, %v1048
    %1050 = vmatmul.f32.gmra.mxu0 %v1023
    %v1051 = vpop.f32.mrf.mxu0
    %v1052 = vadd.f32 %v1011, %v1051
    %1053 = vdwg.mxu0
    %v1054 = vrot.slane %v946, 7
    %v1055 = vrot.slane %v947, 7
    %v1056 = vrot.slane %v948, 7
    %v1057 = vrot.slane %v949, 7
    %v1058 = vsel %vm553, %v1056, %v1057
    %v1059 = vsel %vm553, %v1055, %v1056
    %v1060 = vsel %vm553, %v1054, %v1055
    %v1061 = vsel %vm553, %v1057, %v1054
    %v1062 = vsel %vm562, %v1061, 0.0
    %v1063 = vsel %vm563, %v1060, 0.0
    %v1064 = vsel %vm564, %v1059, 0.0
    %v1065 = vsel %vm565, %v1058, 0.0
    %s1066 = scalar_lea.vmem [#allocation2], 192
    %v1067 = vld [vmem:[%s1066] sm:$0xff]
    %v1068 = vld [vmem:[%s1066 + $0x8] sm:$0xff]
    %v1069 = vld [vmem:[%s1066 + $0x10] sm:$0xff]
    %v1070 = vld [vmem:[%s1066 + $0x18] sm:$0xff]
    %v1072 = vsel %vm234, %v1062, 0
    %v1075 = vsel %vm234, %v1063, 0
    %v1078 = vsel %vm234, %v1064, 0
    %v1081 = vsel %vm234, %v1065, 0
    %1083 = vmatpush.msra.mxu0 0.0
    %1084 = vmatpush.msra.mxu0 0.0
    %1085 = vmatpush.msra.mxu0 0.0
    %1086 = vmatpush.msra.mxu0 0.0
    %1087 = vmatpush.msra.mxu0 0.0
    %1088 = vmatpush.msra.mxu0 0.0
    %1089 = vmatpush.msra.mxu0 0.0
    %1090 = vmatpush.msra.mxu0 0.0
    %1091 = vmatpush.msra.mxu0 0.0
    %1092 = vmatpush.msra.mxu0 0.0
    %1093 = vmatpush.msra.mxu0 0.0
    %1094 = vmatpush.msra.mxu0 0.0
    %1095 = vmatpush.msra.mxu0 %v1070
    %1096 = vmatpush.msra.mxu0 %v1069
    %1097 = vmatpush.msra.mxu0 %v1068
    %1098 = vmatpush.msra.mxu0 %v1067
    %1099 = vmatmul.f32.gmra.mxu0 %v1072
    %v1100 = vpop.f32.mrf.mxu0
    %v1101 = vadd.f32 0.0, %v1100
    %1102 = vmatmul.f32.gmra.mxu0 %v1075
    %v1103 = vpop.f32.mrf.mxu0
    %v1104 = vadd.f32 0.0, %v1103
    %1105 = vmatmul.f32.gmra.mxu0 %v1078
    %v1106 = vpop.f32.mrf.mxu0
    %v1107 = vadd.f32 0.0, %v1106
    %1108 = vmatmul.f32.gmra.mxu0 %v1081
    %v1109 = vpop.f32.mrf.mxu0
    %v1110 = vadd.f32 0.0, %v1109
    %1111 = vdwg.mxu0
    %v1112 = vadd.f32 %v1043, %v1101
    %v1113 = vadd.f32 %v1046, %v1104
    %v1114 = vadd.f32 %v1049, %v1107
    %v1115 = vadd.f32 %v1052, %v1110
    %v1116 = vrot.slane %v946, 1
    %v1117 = vrot.slane %v947, 1
    %v1118 = vrot.slane %v948, 1
    %v1119 = vrot.slane %v949, 1
    %v1120 = vsel %vm624, %v1118, %v1119
    %v1121 = vsel %vm624, %v1117, %v1118
    %v1122 = vsel %vm624, %v1116, %v1117
    %v1123 = vsel %vm624, %v1119, %v1116
    %v1124 = vsel %vm633, %v1122, 0.0
    %v1125 = vsel %vm634, %v1121, 0.0
    %v1126 = vsel %vm635, %v1120, 0.0
    %v1127 = vsel %vm636, %v1123, 0.0
    %s1128 = scalar_lea.vmem [#allocation2], 256
    %v1129 = vld [vmem:[%s1128] sm:$0xff]
    %v1130 = vld [vmem:[%s1128 + $0x8] sm:$0xff]
    %v1131 = vld [vmem:[%s1128 + $0x10] sm:$0xff]
    %v1132 = vld [vmem:[%s1128 + $0x18] sm:$0xff]
    %v1134 = vsel %vm234, %v1124, 0
    %v1137 = vsel %vm234, %v1125, 0
    %v1140 = vsel %vm234, %v1126, 0
    %v1143 = vsel %vm234, %v1127, 0
    %1145 = vmatpush.msra.mxu0 0.0
    %1146 = vmatpush.msra.mxu0 0.0
    %1147 = vmatpush.msra.mxu0 0.0
    %1148 = vmatpush.msra.mxu0 0.0
    %1149 = vmatpush.msra.mxu0 0.0
    %1150 = vmatpush.msra.mxu0 0.0
    %1151 = vmatpush.msra.mxu0 0.0
    %1152 = vmatpush.msra.mxu0 0.0
    %1153 = vmatpush.msra.mxu0 0.0
    %1154 = vmatpush.msra.mxu0 0.0
    %1155 = vmatpush.msra.mxu0 0.0
    %1156 = vmatpush.msra.mxu0 0.0
    %1157 = vmatpush.msra.mxu0 %v1132
    %1158 = vmatpush.msra.mxu0 %v1131
    %1159 = vmatpush.msra.mxu0 %v1130
    %1160 = vmatpush.msra.mxu0 %v1129
    %1161 = vmatmul.f32.gmra.mxu0 %v1134
    %v1162 = vpop.f32.mrf.mxu0
    %v1163 = vadd.f32 0.0, %v1162
    %1164 = vmatmul.f32.gmra.mxu0 %v1137
    %v1165 = vpop.f32.mrf.mxu0
    %v1166 = vadd.f32 0.0, %v1165
    %1167 = vmatmul.f32.gmra.mxu0 %v1140
    %v1168 = vpop.f32.mrf.mxu0
    %v1169 = vadd.f32 0.0, %v1168
    %1170 = vmatmul.f32.gmra.mxu0 %v1143
    %v1171 = vpop.f32.mrf.mxu0
    %v1172 = vadd.f32 0.0, %v1171
    %1173 = vdwg.mxu0
    %v1174 = vadd.f32 %v1112, %v1163
    %v1175 = vadd.f32 %v1113, %v1166
    %v1176 = vadd.f32 %v1114, %v1169
    %v1177 = vadd.f32 %v1115, %v1172
    %v1178 = vrot.slane %v946, 2
    %v1179 = vrot.slane %v947, 2
    %v1180 = vrot.slane %v948, 2
    %v1181 = vrot.slane %v949, 2
    %v1182 = vsel %vm695, %v1180, %v1181
    %v1183 = vsel %vm695, %v1179, %v1180
    %v1184 = vsel %vm695, %v1178, %v1179
    %v1185 = vsel %vm695, %v1181, %v1178
    %v1186 = vsel %vm704, %v1184, 0.0
    %v1187 = vsel %vm705, %v1183, 0.0
    %v1188 = vsel %vm706, %v1182, 0.0
    %v1189 = vsel %vm707, %v1185, 0.0
    %s1190 = scalar_lea.vmem [#allocation2], 288
    %v1191 = vld [vmem:[%s1190] sm:$0xff]
    %v1192 = vld [vmem:[%s1190 + $0x8] sm:$0xff]
    %v1193 = vld [vmem:[%s1190 + $0x10] sm:$0xff]
    %v1194 = vld [vmem:[%s1190 + $0x18] sm:$0xff]
    %v1196 = vsel %vm234, %v1186, 0
    %v1199 = vsel %vm234, %v1187, 0
    %v1202 = vsel %vm234, %v1188, 0
    %v1205 = vsel %vm234, %v1189, 0
    %1207 = vmatpush.msra.mxu0 0.0
    %1208 = vmatpush.msra.mxu0 0.0
    %1209 = vmatpush.msra.mxu0 0.0
    %1210 = vmatpush.msra.mxu0 0.0
    %1211 = vmatpush.msra.mxu0 0.0
    %1212 = vmatpush.msra.mxu0 0.0
    %1213 = vmatpush.msra.mxu0 0.0
    %1214 = vmatpush.msra.mxu0 0.0
    %1215 = vmatpush.msra.mxu0 0.0
    %1216 = vmatpush.msra.mxu0 0.0
    %1217 = vmatpush.msra.mxu0 0.0
    %1218 = vmatpush.msra.mxu0 0.0
    %1219 = vmatpush.msra.mxu0 %v1194
    %1220 = vmatpush.msra.mxu0 %v1193
    %1221 = vmatpush.msra.mxu0 %v1192
    %1222 = vmatpush.msra.mxu0 %v1191
    %1223 = vmatmul.f32.gmra.mxu0 %v1196
    %v1224 = vpop.f32.mrf.mxu0
    %v1225 = vadd.f32 0.0, %v1224
    %1226 = vmatmul.f32.gmra.mxu0 %v1199
    %v1227 = vpop.f32.mrf.mxu0
    %v1228 = vadd.f32 0.0, %v1227
    %1229 = vmatmul.f32.gmra.mxu0 %v1202
    %v1230 = vpop.f32.mrf.mxu0
    %v1231 = vadd.f32 0.0, %v1230
    %1232 = vmatmul.f32.gmra.mxu0 %v1205
    %v1233 = vpop.f32.mrf.mxu0
    %v1234 = vadd.f32 0.0, %v1233
    %1235 = vdwg.mxu0
    %v1236 = vadd.f32 %v1174, %v1225
    %v1237 = vadd.f32 %v1175, %v1228
    %v1238 = vadd.f32 %v1176, %v1231
    %v1239 = vadd.f32 %v1177, %v1234
    %s1240 = scalar_lea.vmem %s5, 1
    %v1241 = vld [vmem:[%s1240] sm:$0x1]
    %v1243 = vperm.slane %v1241, 0
    %v1245 = vadd.f32 %v1236, %v1243
    %v1246 = vadd.f32 %v1237, %v1243
    %v1247 = vadd.f32 %v1238, %v1243
    %v1248 = vadd.f32 %v1239, %v1243
    %v1249 = vmax.f32 %v1245, 0.0
    %v1250 = vmax.f32 %v1246, 0.0
    %v1251 = vmax.f32 %v1247, 0.0
    %v1252 = vmax.f32 %v1248, 0.0
    %vm1253 = vcmp.ne.f32.partialorder %v1245, %v1245
    %vm1254 = vcmp.ne.f32.partialorder %v1246, %v1246
    %vm1255 = vcmp.ne.f32.partialorder %v1247, %v1247
    %vm1256 = vcmp.ne.f32.partialorder %v1248, %v1248
    %v1257 = vadd.f32 %v1245, 0.0
    %v1258 = vadd.f32 %v1246, 0.0
    %v1259 = vadd.f32 %v1247, 0.0
    %v1260 = vadd.f32 %v1248, 0.0
    %v1261 = vand.u32 2147483647, %v1245
    %v1262 = vand.u32 2147483647, %v1246
    %v1263 = vand.u32 2147483647, %v1247
    %v1264 = vand.u32 2147483647, %v1248
    %v1265 = vsub.f32 0.0, %v1261
    %v1266 = vsub.f32 0.0, %v1262
    %v1267 = vsub.f32 0.0, %v1263
    %v1268 = vsub.f32 0.0, %v1264
    %v1269 = vmul.f32 %v1265, 1.442695
    %v1270 = vpow.pop %v1269
    %v1271 = vmul.f32 %v1266, 1.442695
    %v1272 = vpow.pop %v1271
    %v1273 = vmul.f32 %v1267, 1.442695
    %v1274 = vpow.pop %v1273
    %v1275 = vmul.f32 %v1268, 1.442695
    %v1276 = vpow.pop %v1275
    %v1277 = vadd.f32 %v1270, 1.0
    %v1278 = vlog2.pop %v1277
    %v1279 = vmul.f32 %v1278, 0.6931472
    %v1280 = vmul.f32 -0.5, %v1270
    %v1281 = vadd.f32 %v1280, 1.0
    %v1282 = vmul.f32 %v1281, %v1270
    %v1283 = vand.u32 2147483647, %v1270
    %vm1284 = vcmp.lt.f32.partialorder %v1283, 0.0004427343
    %v1285 = vsel %vm1284, %v1282, %v1279
    %v1286 = vadd.f32 %v1272, 1.0
    %v1287 = vlog2.pop %v1286
    %v1288 = vmul.f32 %v1287, 0.6931472
    %v1289 = vmul.f32 -0.5, %v1272
    %v1290 = vadd.f32 %v1289, 1.0
    %v1291 = vmul.f32 %v1290, %v1272
    %v1292 = vand.u32 2147483647, %v1272
    %vm1293 = vcmp.lt.f32.partialorder %v1292, 0.0004427343
    %v1294 = vsel %vm1293, %v1291, %v1288
    %v1295 = vadd.f32 %v1274, 1.0
    %v1296 = vlog2.pop %v1295
    %v1297 = vmul.f32 %v1296, 0.6931472
    %v1298 = vmul.f32 -0.5, %v1274
    %v1299 = vadd.f32 %v1298, 1.0
    %v1300 = vmul.f32 %v1299, %v1274
    %v1301 = vand.u32 2147483647, %v1274
    %vm1302 = vcmp.lt.f32.partialorder %v1301, 0.0004427343
    %v1303 = vsel %vm1302, %v1300, %v1297
    %v1304 = vadd.f32 %v1276, 1.0
    %v1305 = vlog2.pop %v1304
    %v1306 = vmul.f32 %v1305, 0.6931472
    %v1307 = vmul.f32 -0.5, %v1276
    %v1308 = vadd.f32 %v1307, 1.0
    %v1309 = vmul.f32 %v1308, %v1276
    %v1310 = vand.u32 2147483647, %v1276
    %vm1311 = vcmp.lt.f32.partialorder %v1310, 0.0004427343
    %v1312 = vsel %vm1311, %v1309, %v1306
    %v1313 = vadd.f32 %v1249, %v1285
    %v1314 = vadd.f32 %v1250, %v1294
    %v1315 = vadd.f32 %v1251, %v1303
    %v1316 = vadd.f32 %v1252, %v1312
    %v1317 = vsel %vm1253, %v1257, %v1313
    %v1318 = vsel %vm1254, %v1258, %v1314
    %v1319 = vsel %vm1255, %v1259, %v1315
    %v1320 = vsel %vm1256, %v1260, %v1316
    %v1321 = vtanh.pop %v1317
    %v1322 = vtanh.pop %v1318
    %v1323 = vtanh.pop %v1319
    %v1324 = vtanh.pop %v1320
    %v1325 = vmul.f32 %v1245, %v1321
    %v1326 = vmul.f32 %v1246, %v1322
    %v1327 = vmul.f32 %v1247, %v1323
    %v1328 = vmul.f32 %v1248, %v1324
    %v1329 = vxor.u32 %v1325, 2147483648
    %v1330 = vxor.u32 %v1326, 2147483648
    %v1331 = vxor.u32 %v1327, 2147483648
    %v1332 = vxor.u32 %v1328, 2147483648
    %v1333 = vmul.f32 %v1329, 1.442695
    %v1334 = vpow.pop %v1333
    %v1335 = vmul.f32 %v1330, 1.442695
    %v1336 = vpow.pop %v1335
    %v1337 = vmul.f32 %v1331, 1.442695
    %v1338 = vpow.pop %v1337
    %v1339 = vmul.f32 %v1332, 1.442695
    %v1340 = vpow.pop %v1339
    %v1341 = vadd.f32 %v1334, 1.0
    %v1342 = vadd.f32 %v1336, 1.0
    %v1343 = vadd.f32 %v1338, 1.0
    %v1344 = vadd.f32 %v1340, 1.0
    %v1345 = vrcp.pop %v1341
    %v1346 = vmul.f32 %v1341, %v1345
    %v1347 = vsub.f32 1.0, %v1346
    %v1348 = vmul.f32 %v1345, %v1347
    %v1349 = vadd.f32 %v1345, %v1348
    %vm1350 = vweird.f32 %v1341
    %vm1351 = vweird.f32 %v1345
    %vm1352 = vmor %vm1350, %vm1351
    %v1353 = vsel %vm1352, %v1345, %v1349
    %v1354 = vand.u32 2147483647, %v1341
    %vm1355 = vcmp.eq.f32.partialorder %v1354, 8.507059e+37
    %v1356 = vand.u32 %v1341, 2147483648
    %v1357 = vor.u32 1.1754944e-38, %v1356
    %v1358 = vsel %vm1355, %v1357, %v1353
    %v1359 = vmul.f32 1.0, %v1358
    %v1360 = vrcp.pop %v1342
    %v1361 = vmul.f32 %v1342, %v1360
    %v1362 = vsub.f32 1.0, %v1361
    %v1363 = vmul.f32 %v1360, %v1362
    %v1364 = vadd.f32 %v1360, %v1363
    %vm1365 = vweird.f32 %v1342
    %vm1366 = vweird.f32 %v1360
    %vm1367 = vmor %vm1365, %vm1366
    %v1368 = vsel %vm1367, %v1360, %v1364
    %v1369 = vand.u32 2147483647, %v1342
    %vm1370 = vcmp.eq.f32.partialorder %v1369, 8.507059e+37
    %v1371 = vand.u32 %v1342, 2147483648
    %v1372 = vor.u32 1.1754944e-38, %v1371
    %v1373 = vsel %vm1370, %v1372, %v1368
    %v1374 = vmul.f32 1.0, %v1373
    %v1375 = vrcp.pop %v1343
    %v1376 = vmul.f32 %v1343, %v1375
    %v1377 = vsub.f32 1.0, %v1376
    %v1378 = vmul.f32 %v1375, %v1377
    %v1379 = vadd.f32 %v1375, %v1378
    %vm1380 = vweird.f32 %v1343
    %vm1381 = vweird.f32 %v1375
    %vm1382 = vmor %vm1380, %vm1381
    %v1383 = vsel %vm1382, %v1375, %v1379
    %v1384 = vand.u32 2147483647, %v1343
    %vm1385 = vcmp.eq.f32.partialorder %v1384, 8.507059e+37
    %v1386 = vand.u32 %v1343, 2147483648
    %v1387 = vor.u32 1.1754944e-38, %v1386
    %v1388 = vsel %vm1385, %v1387, %v1383
    %v1389 = vmul.f32 1.0, %v1388
    %v1390 = vrcp.pop %v1344
    %v1391 = vmul.f32 %v1344, %v1390
    %v1392 = vsub.f32 1.0, %v1391
    %v1393 = vmul.f32 %v1390, %v1392
    %v1394 = vadd.f32 %v1390, %v1393
    %vm1395 = vweird.f32 %v1344
    %vm1396 = vweird.f32 %v1390
    %vm1397 = vmor %vm1395, %vm1396
    %v1398 = vsel %vm1397, %v1390, %v1394
    %v1399 = vand.u32 2147483647, %v1344
    %vm1400 = vcmp.eq.f32.partialorder %v1399, 8.507059e+37
    %v1401 = vand.u32 %v1344, 2147483648
    %v1402 = vor.u32 1.1754944e-38, %v1401
    %v1403 = vsel %vm1400, %v1402, %v1398
    %v1404 = vmul.f32 1.0, %v1403
    %1409 = vrot.lane.b32.xlu0 %v1359, 96
    %v1410 = vpop.permute.xlu0 %1409
    %1411 = vrot.lane.b32.xlu0 %v1374, 96
    %v1412 = vpop.permute.xlu0 %1411
    %1413 = vrot.lane.b32.xlu0 %v1389, 96
    %v1414 = vpop.permute.xlu0 %1413
    %1415 = vrot.lane.b32.xlu0 %v1404, 96
    %v1416 = vpop.permute.xlu0 %1415
    %v1421 = vmul.f32 %v1325, %v1410
    %v1422 = vmul.f32 %v1326, %v1412
    %v1423 = vmul.f32 %v1327, %v1414
    %v1424 = vmul.f32 %v1328, %v1416
    %v1425 = vadd.f32 %v946, %v1421
    %v1426 = vadd.f32 %v947, %v1422
    %v1427 = vadd.f32 %v948, %v1423
    %v1428 = vadd.f32 %v949, %v1424
    %v1429 = vld [vmem:[%s1] sm:$0x1]
    %s1430 = scalar_lea.vmem %s1, 1
    %v1431 = vld [vmem:[%s1430] sm:$0x1]
    %v1432 = vld [vmem:[#allocation5] sm:$0xff]
    %v1433 = vld [vmem:[#allocation5 + $0x8] sm:$0xff]
    %v1434 = vld [vmem:[#allocation5 + $0x10] sm:$0xff]
    %v1435 = vld [vmem:[#allocation5 + $0x18] sm:$0xff]
    %v1437 = vsel %vm234, %v1425, 0
    %v1440 = vsel %vm234, %v1426, 0
    %v1443 = vsel %vm234, %v1427, 0
    %v1446 = vsel %vm234, %v1428, 0
    %1448 = vmatpush.msra.mxu0 0.0
    %1449 = vmatpush.msra.mxu0 0.0
    %1450 = vmatpush.msra.mxu0 0.0
    %1451 = vmatpush.msra.mxu0 0.0
    %1452 = vmatpush.msra.mxu0 0.0
    %1453 = vmatpush.msra.mxu0 0.0
    %1454 = vmatpush.msra.mxu0 0.0
    %1455 = vmatpush.msra.mxu0 0.0
    %1456 = vmatpush.msra.mxu0 0.0
    %1457 = vmatpush.msra.mxu0 0.0
    %1458 = vmatpush.msra.mxu0 0.0
    %1459 = vmatpush.msra.mxu0 0.0
    %1460 = vmatpush.msra.mxu0 %v1435
    %1461 = vmatpush.msra.mxu0 %v1434
    %1462 = vmatpush.msra.mxu0 %v1433
    %1463 = vmatpush.msra.mxu0 %v1432
    %1464 = vmatmul.f32.gmra.mxu0 %v1437
    %v1465 = vpop.f32.mrf.mxu0
    %v1466 = vadd.f32 0.0, %v1465
    %1467 = vmatmul.f32.gmra.mxu0 %v1440
    %v1468 = vpop.f32.mrf.mxu0
    %v1469 = vadd.f32 0.0, %v1468
    %1470 = vmatmul.f32.gmra.mxu0 %v1443
    %v1471 = vpop.f32.mrf.mxu0
    %v1472 = vadd.f32 0.0, %v1471
    %1473 = vmatmul.f32.gmra.mxu0 %v1446
    %v1474 = vpop.f32.mrf.mxu0
    %v1475 = vadd.f32 0.0, %v1474
    %1476 = vdwg.mxu0
    %v1478 = vperm.slane %v1429, 0
    %1482 = vrot.lane.b32.xlu0 %v1466, 112
    %v1483 = vpop.permute.xlu0 %1482
    %1484 = vrot.lane.b32.xlu0 %v1469, 112
    %v1485 = vpop.permute.xlu0 %1484
    %v1486 = vsel %vm108, %v1466, 0
    %v1488 = vsel %vm108, %v1469, 0
    %v1490 = vsel %vm108, %v1483, 0
    %v1492 = vsel %vm108, %v1485, 0
    %1494 = vmatpush.xpose.msra.mxu0 0.0
    %1495 = vmatpush.xpose.msra.mxu0 0.0
    %1496 = vmatpush.xpose.msra.mxu0 0.0
    %1497 = vmatpush.xpose.msra.mxu0 0.0
    %1498 = vmatpush.xpose.msra.mxu0 0.0
    %1499 = vmatpush.xpose.msra.mxu0 0.0
    %1500 = vmatpush.xpose.msra.mxu0 0.0
    %1501 = vmatpush.xpose.msra.mxu0 0.0
    %1502 = vmatpush.xpose.msra.mxu0 0.0
    %1503 = vmatpush.xpose.msra.mxu0 0.0
    %1504 = vmatpush.xpose.msra.mxu0 0.0
    %1505 = vmatpush.xpose.msra.mxu0 0.0
    %1506 = vmatpush.xpose.msra.mxu0 0.0
    %1507 = vmatpush.xpose.msra.mxu0 0.0
    %1508 = vmatpush.xpose.msra.mxu0 %v1492
    %1509 = vmatpush.xpose.msra.mxu0 %v1490
    %1510 = vmatmul.f32.gmra.mxu0 %v1486
    %v1511 = vpop.f32.mrf.mxu0
    %v1512 = vadd.f32 %v1478, %v1511
    %1513 = vmatmul.f32.gmra.mxu0 %v1488
    %v1514 = vpop.f32.mrf.mxu0
    %v1515 = vadd.f32 %v1478, %v1514
    %1516 = vdwg.mxu0
    %v1517 = vsel %vm108, %v1512, -inf
    %1518 = vmax.xlane.f32.xlu0 %v1517
    %v1519 = vpop.xlane.xlu0 %1518
    %v1520 = vsel %vm108, %v1515, -inf
    %1521 = vmax.xlane.f32.xlu0 %v1520
    %v1522 = vpop.xlane.xlu0 %1521
    %v1523 = vsub.f32 %v1512, %v1519
    %v1524 = vsub.f32 %v1515, %v1522
    %v1525 = vmul.f32 %v1523, 1.442695
    %v1526 = vpow.pop %v1525
    %v1527 = vmul.f32 %v1524, 1.442695
    %v1528 = vpow.pop %v1527
    %v1529 = vsel %vm108, %v1526, 0.0
    %1530 = vadd.xlane.f32.xlu0 %v1529
    %v1531 = vpop.xlane.xlu0 %1530
    %v1532 = vsel %vm108, %v1528, 0.0
    %1533 = vadd.xlane.f32.xlu0 %v1532
    %v1534 = vpop.xlane.xlu0 %1533
    %v1535 = vrcp.pop %v1531
    %v1536 = vrcp.pop %v1534
    %v1537 = vmul.f32 %v1526, %v1535
    %v1538 = vmul.f32 %v1528, %v1536
    %1539 = vrot.lane.b32.xlu0 %v1466, 96
    %v1540 = vpop.permute.xlu0 %1539
    %1541 = vrot.lane.b32.xlu0 %v1469, 96
    %v1542 = vpop.permute.xlu0 %1541
    %v1546 = vsel %vm108, %v1537, 0
    %v1549 = vsel %vm108, %v1538, 0
    %1551 = vmatpush.msra.mxu0 0.0
    %1552 = vmatpush.msra.mxu0 0.0
    %1553 = vmatpush.msra.mxu0 0.0
    %1554 = vmatpush.msra.mxu0 0.0
    %1555 = vmatpush.msra.mxu0 0.0
    %1556 = vmatpush.msra.mxu0 0.0
    %1557 = vmatpush.msra.mxu0 0.0
    %1558 = vmatpush.msra.mxu0 0.0
    %1559 = vmatpush.msra.mxu0 0.0
    %1560 = vmatpush.msra.mxu0 0.0
    %1561 = vmatpush.msra.mxu0 0.0
    %1562 = vmatpush.msra.mxu0 0.0
    %1563 = vmatpush.msra.mxu0 0.0
    %1564 = vmatpush.msra.mxu0 0.0
    %1565 = vmatpush.msra.mxu0 %v1542
    %1566 = vmatpush.msra.mxu0 %v1540
    %1567 = vmatmul.f32.gmra.mxu0 %v1546
    %v1568 = vpop.f32.mrf.mxu0
    %v1569 = vadd.f32 0.0, %v1568
    %1570 = vmatmul.f32.gmra.mxu0 %v1549
    %v1571 = vpop.f32.mrf.mxu0
    %v1572 = vadd.f32 0.0, %v1571
    %1573 = vdwg.mxu0
    %v1574 = vld [vmem:[#allocation7] sm:$0xff]
    %v1575 = vld [vmem:[#allocation7 + $0x8] sm:$0xff]
    %1576 = vrot.lane.b32.xlu0 %v1466, 80
    %v1577 = vpop.permute.xlu0 %1576
    %1578 = vrot.lane.b32.xlu0 %v1469, 80
    %v1579 = vpop.permute.xlu0 %1578
    %1580 = vrot.lane.b32.xlu0 %v1466, 64
    %v1581 = vpop.permute.xlu0 %1580
    %1582 = vrot.lane.b32.xlu0 %v1469, 64
    %v1583 = vpop.permute.xlu0 %1582
    %v1584 = vsel %vm108, %v1577, 0
    %v1586 = vsel %vm108, %v1579, 0
    %v1588 = vsel %vm108, %v1581, 0
    %v1590 = vsel %vm108, %v1583, 0
    %1592 = vmatpush.xpose.msra.mxu0 0.0
    %1593 = vmatpush.xpose.msra.mxu0 0.0
    %1594 = vmatpush.xpose.msra.mxu0 0.0
    %1595 = vmatpush.xpose.msra.mxu0 0.0
    %1596 = vmatpush.xpose.msra.mxu0 0.0
    %1597 = vmatpush.xpose.msra.mxu0 0.0
    %1598 = vmatpush.xpose.msra.mxu0 0.0
    %1599 = vmatpush.xpose.msra.mxu0 0.0
    %1600 = vmatpush.xpose.msra.mxu0 0.0
    %1601 = vmatpush.xpose.msra.mxu0 0.0
    %1602 = vmatpush.xpose.msra.mxu0 0.0
    %1603 = vmatpush.xpose.msra.mxu0 0.0
    %1604 = vmatpush.xpose.msra.mxu0 0.0
    %1605 = vmatpush.xpose.msra.mxu0 0.0
    %1606 = vmatpush.xpose.msra.mxu0 %v1590
    %1607 = vmatpush.xpose.msra.mxu0 %v1588
    %1608 = vmatmul.f32.gmra.mxu0 %v1584
    %v1609 = vpop.f32.mrf.mxu0
    %v1610 = vadd.f32 %v1478, %v1609
    %1611 = vmatmul.f32.gmra.mxu0 %v1586
    %v1612 = vpop.f32.mrf.mxu0
    %v1613 = vadd.f32 %v1478, %v1612
    %1614 = vdwg.mxu0
    %v1615 = vsel %vm108, %v1610, -inf
    %1616 = vmax.xlane.f32.xlu0 %v1615
    %v1617 = vpop.xlane.xlu0 %1616
    %v1618 = vsel %vm108, %v1613, -inf
    %1619 = vmax.xlane.f32.xlu0 %v1618
    %v1620 = vpop.xlane.xlu0 %1619
    %v1621 = vsub.f32 %v1610, %v1617
    %v1622 = vsub.f32 %v1613, %v1620
    %v1623 = vmul.f32 %v1621, 1.442695
    %v1624 = vpow.pop %v1623
    %v1625 = vmul.f32 %v1622, 1.442695
    %v1626 = vpow.pop %v1625
    %v1627 = vsel %vm108, %v1624, 0.0
    %1628 = vadd.xlane.f32.xlu0 %v1627
    %v1629 = vpop.xlane.xlu0 %1628
    %v1630 = vsel %vm108, %v1626, 0.0
    %1631 = vadd.xlane.f32.xlu0 %v1630
    %v1632 = vpop.xlane.xlu0 %1631
    %v1633 = vrcp.pop %v1629
    %v1634 = vrcp.pop %v1632
    %v1635 = vmul.f32 %v1624, %v1633
    %v1636 = vmul.f32 %v1626, %v1634
    %1637 = vrot.lane.b32.xlu0 %v1466, 48
    %v1638 = vpop.permute.xlu0 %1637
    %1639 = vrot.lane.b32.xlu0 %v1469, 48
    %v1640 = vpop.permute.xlu0 %1639
    %v1644 = vsel %vm108, %v1635, 0
    %v1647 = vsel %vm108, %v1636, 0
    %1649 = vmatpush.msra.mxu0 0.0
    %1650 = vmatpush.msra.mxu0 0.0
    %1651 = vmatpush.msra.mxu0 0.0
    %1652 = vmatpush.msra.mxu0 0.0
    %1653 = vmatpush.msra.mxu0 0.0
    %1654 = vmatpush.msra.mxu0 0.0
    %1655 = vmatpush.msra.mxu0 0.0
    %1656 = vmatpush.msra.mxu0 0.0
    %1657 = vmatpush.msra.mxu0 0.0
    %1658 = vmatpush.msra.mxu0 0.0
    %1659 = vmatpush.msra.mxu0 0.0
    %1660 = vmatpush.msra.mxu0 0.0
    %1661 = vmatpush.msra.mxu0 0.0
    %1662 = vmatpush.msra.mxu0 0.0
    %1663 = vmatpush.msra.mxu0 %v1640
    %1664 = vmatpush.msra.mxu0 %v1638
    %1665 = vmatmul.f32.gmra.mxu0 %v1644
    %v1666 = vpop.f32.mrf.mxu0
    %v1667 = vadd.f32 0.0, %v1666
    %1668 = vmatmul.f32.gmra.mxu0 %v1647
    %v1669 = vpop.f32.mrf.mxu0
    %v1670 = vadd.f32 0.0, %v1669
    %1671 = vdwg.mxu0
    %s1672 = scalar_lea.vmem [#allocation7], 16
    %v1673 = vld [vmem:[%s1672] sm:$0xff]
    %v1674 = vld [vmem:[%s1672 + $0x8] sm:$0xff]
    %v1676 = vsel %vm108, %v1667, 0
    %v1679 = vsel %vm108, %v1670, 0
    %1681 = vmatpush.msra.mxu0 0.0
    %1682 = vmatpush.msra.mxu0 0.0
    %1683 = vmatpush.msra.mxu0 0.0
    %1684 = vmatpush.msra.mxu0 0.0
    %1685 = vmatpush.msra.mxu0 0.0
    %1686 = vmatpush.msra.mxu0 0.0
    %1687 = vmatpush.msra.mxu0 0.0
    %1688 = vmatpush.msra.mxu0 0.0
    %1689 = vmatpush.msra.mxu0 0.0
    %1690 = vmatpush.msra.mxu0 0.0
    %1691 = vmatpush.msra.mxu0 0.0
    %1692 = vmatpush.msra.mxu0 0.0
    %1693 = vmatpush.msra.mxu0 0.0
    %1694 = vmatpush.msra.mxu0 0.0
    %1695 = vmatpush.msra.mxu0 %v1674
    %1696 = vmatpush.msra.mxu0 %v1673
    %1697 = vmatmul.f32.gmra.mxu0 %v1676
    %v1698 = vpop.f32.mrf.mxu0
    %v1699 = vadd.f32 0.0, %v1698
    %1700 = vmatmul.f32.gmra.mxu0 %v1679
    %v1701 = vpop.f32.mrf.mxu0
    %v1702 = vadd.f32 0.0, %v1701
    %1703 = vdwg.mxu0
    %v1705 = vsel %vm108, %v1569, 0
    %v1708 = vsel %vm108, %v1572, 0
    %1710 = vmatpush.msra.mxu0 0.0
    %1711 = vmatpush.msra.mxu0 0.0
    %1712 = vmatpush.msra.mxu0 0.0
    %1713 = vmatpush.msra.mxu0 0.0
    %1714 = vmatpush.msra.mxu0 0.0
    %1715 = vmatpush.msra.mxu0 0.0
    %1716 = vmatpush.msra.mxu0 0.0
    %1717 = vmatpush.msra.mxu0 0.0
    %1718 = vmatpush.msra.mxu0 0.0
    %1719 = vmatpush.msra.mxu0 0.0
    %1720 = vmatpush.msra.mxu0 0.0
    %1721 = vmatpush.msra.mxu0 0.0
    %1722 = vmatpush.msra.mxu0 0.0
    %1723 = vmatpush.msra.mxu0 0.0
    %1724 = vmatpush.msra.mxu0 %v1575
    %1725 = vmatpush.msra.mxu0 %v1574
    %1726 = vmatmul.f32.gmra.mxu0 %v1705
    %v1727 = vpop.f32.mrf.mxu0
    %v1728 = vadd.f32 %v1699, %v1727
    %1729 = vmatmul.f32.gmra.mxu0 %v1708
    %v1730 = vpop.f32.mrf.mxu0
    %v1731 = vadd.f32 %v1702, %v1730
    %1732 = vdwg.mxu0
    %v1734 = vperm.slane %v1431, 0
    %1738 = vrot.lane.b32.xlu0 %v1472, 112
    %v1739 = vpop.permute.xlu0 %1738
    %1740 = vrot.lane.b32.xlu0 %v1475, 112
    %v1741 = vpop.permute.xlu0 %1740
    %v1742 = vsel %vm108, %v1472, 0
    %v1744 = vsel %vm108, %v1475, 0
    %v1746 = vsel %vm108, %v1739, 0
    %v1748 = vsel %vm108, %v1741, 0
    %1750 = vmatpush.xpose.msra.mxu0 0.0
    %1751 = vmatpush.xpose.msra.mxu0 0.0
    %1752 = vmatpush.xpose.msra.mxu0 0.0
    %1753 = vmatpush.xpose.msra.mxu0 0.0
    %1754 = vmatpush.xpose.msra.mxu0 0.0
    %1755 = vmatpush.xpose.msra.mxu0 0.0
    %1756 = vmatpush.xpose.msra.mxu0 0.0
    %1757 = vmatpush.xpose.msra.mxu0 0.0
    %1758 = vmatpush.xpose.msra.mxu0 0.0
    %1759 = vmatpush.xpose.msra.mxu0 0.0
    %1760 = vmatpush.xpose.msra.mxu0 0.0
    %1761 = vmatpush.xpose.msra.mxu0 0.0
    %1762 = vmatpush.xpose.msra.mxu0 0.0
    %1763 = vmatpush.xpose.msra.mxu0 0.0
    %1764 = vmatpush.xpose.msra.mxu0 %v1748
    %1765 = vmatpush.xpose.msra.mxu0 %v1746
    %1766 = vmatmul.f32.gmra.mxu0 %v1742
    %v1767 = vpop.f32.mrf.mxu0
    %v1768 = vadd.f32 %v1734, %v1767
    %1769 = vmatmul.f32.gmra.mxu0 %v1744
    %v1770 = vpop.f32.mrf.mxu0
    %v1771 = vadd.f32 %v1734, %v1770
    %1772 = vdwg.mxu0
    %v1773 = vsel %vm108, %v1768, -inf
    %1774 = vmax.xlane.f32.xlu0 %v1773
    %v1775 = vpop.xlane.xlu0 %1774
    %v1776 = vsel %vm108, %v1771, -inf
    %1777 = vmax.xlane.f32.xlu0 %v1776
    %v1778 = vpop.xlane.xlu0 %1777
    %v1779 = vsub.f32 %v1768, %v1775
    %v1780 = vsub.f32 %v1771, %v1778
    %v1781 = vmul.f32 %v1779, 1.442695
    %v1782 = vpow.pop %v1781
    %v1783 = vmul.f32 %v1780, 1.442695
    %v1784 = vpow.pop %v1783
    %v1785 = vsel %vm108, %v1782, 0.0
    %1786 = vadd.xlane.f32.xlu0 %v1785
    %v1787 = vpop.xlane.xlu0 %1786
    %v1788 = vsel %vm108, %v1784, 0.0
    %1789 = vadd.xlane.f32.xlu0 %v1788
    %v1790 = vpop.xlane.xlu0 %1789
    %v1791 = vrcp.pop %v1787
    %v1792 = vrcp.pop %v1790
    %v1793 = vmul.f32 %v1782, %v1791
    %v1794 = vmul.f32 %v1784, %v1792
    %1795 = vrot.lane.b32.xlu0 %v1472, 96
    %v1796 = vpop.permute.xlu0 %1795
    %1797 = vrot.lane.b32.xlu0 %v1475, 96
    %v1798 = vpop.permute.xlu0 %1797
    %v1802 = vsel %vm108, %v1793, 0
    %v1805 = vsel %vm108, %v1794, 0
    %1807 = vmatpush.msra.mxu0 0.0
    %1808 = vmatpush.msra.mxu0 0.0
    %1809 = vmatpush.msra.mxu0 0.0
    %1810 = vmatpush.msra.mxu0 0.0
    %1811 = vmatpush.msra.mxu0 0.0
    %1812 = vmatpush.msra.mxu0 0.0
    %1813 = vmatpush.msra.mxu0 0.0
    %1814 = vmatpush.msra.mxu0 0.0
    %1815 = vmatpush.msra.mxu0 0.0
    %1816 = vmatpush.msra.mxu0 0.0
    %1817 = vmatpush.msra.mxu0 0.0
    %1818 = vmatpush.msra.mxu0 0.0
    %1819 = vmatpush.msra.mxu0 0.0
    %1820 = vmatpush.msra.mxu0 0.0
    %1821 = vmatpush.msra.mxu0 %v1798
    %1822 = vmatpush.msra.mxu0 %v1796
    %1823 = vmatmul.f32.gmra.mxu0 %v1802
    %v1824 = vpop.f32.mrf.mxu0
    %v1825 = vadd.f32 0.0, %v1824
    %1826 = vmatmul.f32.gmra.mxu0 %v1805
    %v1827 = vpop.f32.mrf.mxu0
    %v1828 = vadd.f32 0.0, %v1827
    %1829 = vdwg.mxu0
    %1830 = vrot.lane.b32.xlu0 %v1472, 80
    %v1831 = vpop.permute.xlu0 %1830
    %1832 = vrot.lane.b32.xlu0 %v1475, 80
    %v1833 = vpop.permute.xlu0 %1832
    %1834 = vrot.lane.b32.xlu0 %v1472, 64
    %v1835 = vpop.permute.xlu0 %1834
    %1836 = vrot.lane.b32.xlu0 %v1475, 64
    %v1837 = vpop.permute.xlu0 %1836
    %v1838 = vsel %vm108, %v1831, 0
    %v1840 = vsel %vm108, %v1833, 0
    %v1842 = vsel %vm108, %v1835, 0
    %v1844 = vsel %vm108, %v1837, 0
    %1846 = vmatpush.xpose.msra.mxu0 0.0
    %1847 = vmatpush.xpose.msra.mxu0 0.0
    %1848 = vmatpush.xpose.msra.mxu0 0.0
    %1849 = vmatpush.xpose.msra.mxu0 0.0
    %1850 = vmatpush.xpose.msra.mxu0 0.0
    %1851 = vmatpush.xpose.msra.mxu0 0.0
    %1852 = vmatpush.xpose.msra.mxu0 0.0
    %1853 = vmatpush.xpose.msra.mxu0 0.0
    %1854 = vmatpush.xpose.msra.mxu0 0.0
    %1855 = vmatpush.xpose.msra.mxu0 0.0
    %1856 = vmatpush.xpose.msra.mxu0 0.0
    %1857 = vmatpush.xpose.msra.mxu0 0.0
    %1858 = vmatpush.xpose.msra.mxu0 0.0
    %1859 = vmatpush.xpose.msra.mxu0 0.0
    %1860 = vmatpush.xpose.msra.mxu0 %v1844
    %1861 = vmatpush.xpose.msra.mxu0 %v1842
    %1862 = vmatmul.f32.gmra.mxu0 %v1838
    %v1863 = vpop.f32.mrf.mxu0
    %v1864 = vadd.f32 %v1734, %v1863
    %1865 = vmatmul.f32.gmra.mxu0 %v1840
    %v1866 = vpop.f32.mrf.mxu0
    %v1867 = vadd.f32 %v1734, %v1866
    %1868 = vdwg.mxu0
    %v1869 = vsel %vm108, %v1864, -inf
    %1870 = vmax.xlane.f32.xlu0 %v1869
    %v1871 = vpop.xlane.xlu0 %1870
    %v1872 = vsel %vm108, %v1867, -inf
    %1873 = vmax.xlane.f32.xlu0 %v1872
    %v1874 = vpop.xlane.xlu0 %1873
    %v1875 = vsub.f32 %v1864, %v1871
    %v1876 = vsub.f32 %v1867, %v1874
    %v1877 = vmul.f32 %v1875, 1.442695
    %v1878 = vpow.pop %v1877
    %v1879 = vmul.f32 %v1876, 1.442695
    %v1880 = vpow.pop %v1879
    %v1881 = vsel %vm108, %v1878, 0.0
    %1882 = vadd.xlane.f32.xlu0 %v1881
    %v1883 = vpop.xlane.xlu0 %1882
    %v1884 = vsel %vm108, %v1880, 0.0
    %1885 = vadd.xlane.f32.xlu0 %v1884
    %v1886 = vpop.xlane.xlu0 %1885
    %v1887 = vrcp.pop %v1883
    %v1888 = vrcp.pop %v1886
    %v1889 = vmul.f32 %v1878, %v1887
    %v1890 = vmul.f32 %v1880, %v1888
    %1891 = vrot.lane.b32.xlu0 %v1472, 48
    %v1892 = vpop.permute.xlu0 %1891
    %1893 = vrot.lane.b32.xlu0 %v1475, 48
    %v1894 = vpop.permute.xlu0 %1893
    %v1898 = vsel %vm108, %v1889, 0
    %v1901 = vsel %vm108, %v1890, 0
    %1903 = vmatpush.msra.mxu0 0.0
    %1904 = vmatpush.msra.mxu0 0.0
    %1905 = vmatpush.msra.mxu0 0.0
    %1906 = vmatpush.msra.mxu0 0.0
    %1907 = vmatpush.msra.mxu0 0.0
    %1908 = vmatpush.msra.mxu0 0.0
    %1909 = vmatpush.msra.mxu0 0.0
    %1910 = vmatpush.msra.mxu0 0.0
    %1911 = vmatpush.msra.mxu0 0.0
    %1912 = vmatpush.msra.mxu0 0.0
    %1913 = vmatpush.msra.mxu0 0.0
    %1914 = vmatpush.msra.mxu0 0.0
    %1915 = vmatpush.msra.mxu0 0.0
    %1916 = vmatpush.msra.mxu0 0.0
    %1917 = vmatpush.msra.mxu0 %v1894
    %1918 = vmatpush.msra.mxu0 %v1892
    %1919 = vmatmul.f32.gmra.mxu0 %v1898
    %v1920 = vpop.f32.mrf.mxu0
    %v1921 = vadd.f32 0.0, %v1920
    %1922 = vmatmul.f32.gmra.mxu0 %v1901
    %v1923 = vpop.f32.mrf.mxu0
    %v1924 = vadd.f32 0.0, %v1923
    %1925 = vdwg.mxu0
    %v1927 = vsel %vm108, %v1921, 0
    %v1930 = vsel %vm108, %v1924, 0
    %1932 = vmatpush.msra.mxu0 0.0
    %1933 = vmatpush.msra.mxu0 0.0
    %1934 = vmatpush.msra.mxu0 0.0
    %1935 = vmatpush.msra.mxu0 0.0
    %1936 = vmatpush.msra.mxu0 0.0
    %1937 = vmatpush.msra.mxu0 0.0
    %1938 = vmatpush.msra.mxu0 0.0
    %1939 = vmatpush.msra.mxu0 0.0
    %1940 = vmatpush.msra.mxu0 0.0
    %1941 = vmatpush.msra.mxu0 0.0
    %1942 = vmatpush.msra.mxu0 0.0
    %1943 = vmatpush.msra.mxu0 0.0
    %1944 = vmatpush.msra.mxu0 0.0
    %1945 = vmatpush.msra.mxu0 0.0
    %1946 = vmatpush.msra.mxu0 %v1674
    %1947 = vmatpush.msra.mxu0 %v1673
    %1948 = vmatmul.f32.gmra.mxu0 %v1927
    %v1949 = vpop.f32.mrf.mxu0
    %v1950 = vadd.f32 0.0, %v1949
    %1951 = vmatmul.f32.gmra.mxu0 %v1930
    %v1952 = vpop.f32.mrf.mxu0
    %v1953 = vadd.f32 0.0, %v1952
    %1954 = vdwg.mxu0
    %v1956 = vsel %vm108, %v1825, 0
    %v1959 = vsel %vm108, %v1828, 0
    %1961 = vmatpush.msra.mxu0 0.0
    %1962 = vmatpush.msra.mxu0 0.0
    %1963 = vmatpush.msra.mxu0 0.0
    %1964 = vmatpush.msra.mxu0 0.0
    %1965 = vmatpush.msra.mxu0 0.0
    %1966 = vmatpush.msra.mxu0 0.0
    %1967 = vmatpush.msra.mxu0 0.0
    %1968 = vmatpush.msra.mxu0 0.0
    %1969 = vmatpush.msra.mxu0 0.0
    %1970 = vmatpush.msra.mxu0 0.0
    %1971 = vmatpush.msra.mxu0 0.0
    %1972 = vmatpush.msra.mxu0 0.0
    %1973 = vmatpush.msra.mxu0 0.0
    %1974 = vmatpush.msra.mxu0 0.0
    %1975 = vmatpush.msra.mxu0 %v1575
    %1976 = vmatpush.msra.mxu0 %v1574
    %1977 = vmatmul.f32.gmra.mxu0 %v1956
    %v1978 = vpop.f32.mrf.mxu0
    %v1979 = vadd.f32 %v1950, %v1978
    %1980 = vmatmul.f32.gmra.mxu0 %v1959
    %v1981 = vpop.f32.mrf.mxu0
    %v1982 = vadd.f32 %v1953, %v1981
    %1983 = vdwg.mxu0
    %v1984 = vadd.f32 %v1728, %v1425
    %v1985 = vadd.f32 %v1731, %v1426
    %v1986 = vadd.f32 %v1979, %v1427
    %v1987 = vadd.f32 %v1982, %v1428
    %v1988 = vsel %vm234, %v1984, 0.0
    %1989 = vadd.xlane.f32.xlu0 %v1988
    %v1990 = vpop.xlane.xlu0 %1989
    %v1991 = vsel %vm234, %v1985, 0.0
    %1992 = vadd.xlane.f32.xlu0 %v1991
    %v1993 = vpop.xlane.xlu0 %1992
    %v1994 = vsel %vm234, %v1986, 0.0
    %1995 = vadd.xlane.f32.xlu0 %v1994
    %v1996 = vpop.xlane.xlu0 %1995
    %v1997 = vsel %vm234, %v1987, 0.0
    %1998 = vadd.xlane.f32.xlu0 %v1997
    %v1999 = vpop.xlane.xlu0 %1998
    %v2000 = vrcp.pop 32.0
    %v2001 = vmul.f32 32.0, %v2000
    %v2002 = vsub.f32 1.0, %v2001
    %v2003 = vmul.f32 %v2000, %v2002
    %v2004 = vadd.f32 %v2000, %v2003
    %vm2005 = vweird.f32 %v2000
    %v2006 = vsel %vm2005, %v2000, %v2004
    %v2007 = vmul.f32 %v1990, %v2006
    %v2008 = vmul.f32 %v1993, %v2006
    %v2009 = vmul.f32 %v1996, %v2006
    %v2010 = vmul.f32 %v1999, %v2006
    %v2011 = vsub.f32 %v1984, %v2007
    %v2012 = vsub.f32 %v1985, %v2008
    %v2013 = vsub.f32 %v1986, %v2009
    %v2014 = vsub.f32 %v1987, %v2010
    %v2015 = vmul.f32 %v2011, %v2011
    %v2016 = vmul.f32 %v2012, %v2012
    %v2017 = vmul.f32 %v2013, %v2013
    %v2018 = vmul.f32 %v2014, %v2014
    %v2019 = vsel %vm234, %v2015, 0.0
    %2020 = vadd.xlane.f32.xlu0 %v2019
    %v2021 = vpop.xlane.xlu0 %2020
    %v2022 = vsel %vm234, %v2016, 0.0
    %2023 = vadd.xlane.f32.xlu0 %v2022
    %v2024 = vpop.xlane.xlu0 %2023
    %v2025 = vsel %vm234, %v2017, 0.0
    %2026 = vadd.xlane.f32.xlu0 %v2025
    %v2027 = vpop.xlane.xlu0 %2026
    %v2028 = vsel %vm234, %v2018, 0.0
    %2029 = vadd.xlane.f32.xlu0 %v2028
    %v2030 = vpop.xlane.xlu0 %2029
    %v2031 = vmul.f32 %v2021, %v2006
    %v2032 = vmul.f32 %v2024, %v2006
    %v2033 = vmul.f32 %v2027, %v2006
    %v2034 = vmul.f32 %v2030, %v2006
    %v2035 = vadd.f32 %v2031, 1e-05
    %v2036 = vadd.f32 %v2032, 1e-05
    %v2037 = vadd.f32 %v2033, 1e-05
    %v2038 = vadd.f32 %v2034, 1e-05
    %v2039 = vrsqrt.pop %v2035
    %v2040 = vmul.f32 %v2039, %v2035
    %v2041 = vmul.f32 %v2040, %v2039
    %v2042 = vmul.f32 0.5, %v2041
    %v2043 = vsub.f32 1.5, %v2042
    %v2044 = vmul.f32 %v2039, %v2043
    %vm2045 = vweird.f32 %v2035
    %vm2046 = vweird.f32 %v2039
    %vm2047 = vmor %vm2045, %vm2046
    %v2048 = vsel %vm2047, %v2039, %v2044
    %v2049 = vrsqrt.pop %v2036
    %v2050 = vmul.f32 %v2049, %v2036
    %v2051 = vmul.f32 %v2050, %v2049
    %v2052 = vmul.f32 0.5, %v2051
    %v2053 = vsub.f32 1.5, %v2052
    %v2054 = vmul.f32 %v2049, %v2053
    %vm2055 = vweird.f32 %v2036
    %vm2056 = vweird.f32 %v2049
    %vm2057 = vmor %vm2055, %vm2056
    %v2058 = vsel %vm2057, %v2049, %v2054
    %v2059 = vrsqrt.pop %v2037
    %v2060 = vmul.f32 %v2059, %v2037
    %v2061 = vmul.f32 %v2060, %v2059
    %v2062 = vmul.f32 0.5, %v2061
    %v2063 = vsub.f32 1.5, %v2062
    %v2064 = vmul.f32 %v2059, %v2063
    %vm2065 = vweird.f32 %v2037
    %vm2066 = vweird.f32 %v2059
    %vm2067 = vmor %vm2065, %vm2066
    %v2068 = vsel %vm2067, %v2059, %v2064
    %v2069 = vrsqrt.pop %v2038
    %v2070 = vmul.f32 %v2069, %v2038
    %v2071 = vmul.f32 %v2070, %v2069
    %v2072 = vmul.f32 0.5, %v2071
    %v2073 = vsub.f32 1.5, %v2072
    %v2074 = vmul.f32 %v2069, %v2073
    %vm2075 = vweird.f32 %v2038
    %vm2076 = vweird.f32 %v2069
    %vm2077 = vmor %vm2075, %vm2076
    %v2078 = vsel %vm2077, %v2069, %v2074
    %v2079 = vmul.f32 %v2011, %v2048
    %v2080 = vmul.f32 %v2012, %v2058
    %v2081 = vmul.f32 %v2013, %v2068
    %v2082 = vmul.f32 %v2014, %v2078
    %v2083 = vld [vmem:[%s8] sm:$0x1]
    %v2085 = vperm.slane %v2083, 0
    %v2087 = vmul.f32 %v2079, %v2085
    %v2088 = vmul.f32 %v2080, %v2085
    %v2089 = vmul.f32 %v2081, %v2085
    %v2090 = vmul.f32 %v2082, %v2085
    %v2091 = vld [vmem:[%s9] sm:$0x1]
    %v2093 = vperm.slane %v2091, 0
    %v2095 = vadd.f32 %v2087, %v2093
    %v2096 = vadd.f32 %v2088, %v2093
    %v2097 = vadd.f32 %v2089, %v2093
    %v2098 = vadd.f32 %v2090, %v2093
    %v2099 = vadd.f32 %v1425, %v2095
    %v2100 = vadd.f32 %v1426, %v2096
    %v2101 = vadd.f32 %v1427, %v2097
    %v2102 = vadd.f32 %v1428, %v2098
    %v2103 = vlaneseq
    %v2104 = vand.u32 %v2103, 127
    %v2105 = vmul.u32 %v357, 16
    %vm2106 = vcmp.ge.s32.totalorder %v2104, %v2105
    %v2107 = vadd.s32 %v357, 1
    %v2108 = vmul.u32 %v2107, 16
    %vm2109 = vcmp.lt.s32.totalorder %v2104, %v2108
    %vm2110 = vmand %vm2106, %vm2109
    %v2111 = vsel %vm2110, 0.0625, 0.0
    %v2113 = vsel %vm234, %v2111, 0
    %2115 = vmatpush.msra.mxu0 0.0
    %2116 = vmatpush.msra.mxu0 0.0
    %2117 = vmatpush.msra.mxu0 0.0
    %2118 = vmatpush.msra.mxu0 0.0
    %2119 = vmatpush.msra.mxu0 0.0
    %2120 = vmatpush.msra.mxu0 0.0
    %2121 = vmatpush.msra.mxu0 0.0
    %2122 = vmatpush.msra.mxu0 0.0
    %2123 = vmatpush.msra.mxu0 0.0
    %2124 = vmatpush.msra.mxu0 0.0
    %2125 = vmatpush.msra.mxu0 0.0
    %2126 = vmatpush.msra.mxu0 0.0
    %2127 = vmatpush.msra.mxu0 %v2102
    %2128 = vmatpush.msra.mxu0 %v2101
    %2129 = vmatpush.msra.mxu0 %v2100
    %2130 = vmatpush.msra.mxu0 %v2099
    %2131 = vmatmul.f32.gmra.mxu0 %v2113
    %v2132 = vpop.f32.mrf.mxu0
    %v2133 = vadd.f32 0.0, %v2132
    %2134 = vdwg.mxu0
    %v2135 = vld [vmem:[#allocation8] sm:$0xff]
    %v2136 = vld [vmem:[#allocation8 + $0x8] sm:$0xff]
    %v2137 = vld [vmem:[#allocation8 + $0x10] sm:$0xff]
    %v2138 = vld [vmem:[#allocation8 + $0x18] sm:$0xff]
    %v2140 = vsel %vm234, %v2133, 0
    %2142 = vmatpush.msra.mxu0 0.0
    %2143 = vmatpush.msra.mxu0 0.0
    %2144 = vmatpush.msra.mxu0 0.0
    %2145 = vmatpush.msra.mxu0 0.0
    %2146 = vmatpush.msra.mxu0 0.0
    %2147 = vmatpush.msra.mxu0 0.0
    %2148 = vmatpush.msra.mxu0 0.0
    %2149 = vmatpush.msra.mxu0 0.0
    %2150 = vmatpush.msra.mxu0 0.0
    %2151 = vmatpush.msra.mxu0 0.0
    %2152 = vmatpush.msra.mxu0 0.0
    %2153 = vmatpush.msra.mxu0 0.0
    %2154 = vmatpush.msra.mxu0 %v2138
    %2155 = vmatpush.msra.mxu0 %v2137
    %2156 = vmatpush.msra.mxu0 %v2136
    %2157 = vmatpush.msra.mxu0 %v2135
    %2158 = vmatmul.f32.gmra.mxu0 %v2140
    %v2159 = vpop.f32.mrf.mxu0
    %v2160 = vadd.f32 0.0, %v2159
    %2161 = vdwg.mxu0
    %vm2162 = vcmask 254976
    %2163 = vst.msk [vmem:[#allocation10] sm:$0x3] %vm2162, %v2160
    // Predicated region
    $region62: #{tpu_custom_call.1} parent=1 // pred_check
      _
    $region63: #{tpu_custom_call.1} parent=1 // pred_check_branch
      %2165 = sbr.rel (0) target = $region65
    $region64: #{tpu_custom_call.1} parent=1 // pred_region
      %2167 = vsyncadd [#allocation4], 0
      %s2169 = sshll.u32 [#allocation10], 4
      %s2170 = int_to_ptr.vmem [resolvable:$true] %s2169
      %s2171 = sshll.u32 %s11, 4
      %s2172 = int_to_ptr.hbm [resolvable:$true] %s2171
      %2174 = dma.vmem_to_hbm [thread:$0]  %s2170, 32, %s2172, [#allocation4]
    $region65: #{tpu_custom_call.1} parent=1 // pred_fallthru
      _
    // Predicated region
    $region66: #{tpu_custom_call.1} parent=1 // pred_check
      _
    $region67: #{tpu_custom_call.1} parent=1 // pred_check_branch
      %2176 = sbr.rel (0) target = $region69
    $region68: #{tpu_custom_call.1} parent=1 // pred_region
      %2178 = dma.done [#allocation4], 32
    $region69: #{tpu_custom_call.1} parent=1 // pred_fallthru
      _
    %2179 = vsyncpa [#allocation3], 1
    %2180 = vsyncpa [#allocation6], 1
    %2181 = vsyncpa [#allocation9], 1
    %2182 = vsyncpa [#allocation4], 1

</llo_original>
